<compile_context>
chip_gen: v7x
topology: tpu7x:2x2x1
jax: 0.10.0
libtpu: 0.0.40
codegen_flags: <defaults>
</compile_context>

<pallas_src>
import functools

import jax
import jax.numpy as jnp
from jax.experimental import pallas as pl
from jax.experimental.pallas import tpu as pltpu

BN_EPS = 1e-5


def coord_attention_kernel(x_ref, pool_ref, eh_ref, ew_ref,
                           w1_ref, b1_ref, w2_ref, b2_ref, w3_ref, b3_ref,
                           o_ref, *, hw_chunk):
    """One batch element per grid step (leading N dim squeezed away).

    x_ref   : (C, H*W)    feature map, lane axis = H*W (lane dense), caller dtype
    pool_ref: (H*W, H+W)  [Ph/W | Pw/H] bf16 averaging matrix -> both pools in one matmul
    eh_ref  : (H,   H*W)  bf16 0/1 matrix broadcasting a_h (C,H) -> (C,H*W)
    ew_ref  : (W,   H*W)  bf16 0/1 matrix broadcasting a_w (C,W) -> (C,H*W)
    w1/b1   : conv1 (1x1) with BatchNorm (eval) pre-folded in the wrapper
    w2/b2, w3/b3 : conv2 / conv3 (1x1)
    """
    H = eh_ref.shape[0]
    hw = x_ref.shape[-1]
    num_chunks = hw // hw_chunk

    # ---- Stage 1: pools + 1x1 convs + activations (tiny (C, H+W) tensors) ----
    # pool_h (mean over W) and pool_w (mean over H) in one MXU matmul; x stays
    # in its native dtype (no eager f32 copy of the whole feature map).
    x_native = x_ref[...]                                                # (C, H*W)
    cat = jnp.dot(x_native, pool_ref[...],
                  preferred_element_type=jnp.float32)                    # (C, H+W)

    # conv1 (1x1, BN folded) + h_swish
    y = jnp.dot(w1_ref[...], cat, preferred_element_type=jnp.float32) + b1_ref[...]
    y = y * jnp.clip(y + 3.0, 0.0, 6.0) * (1.0 / 6.0)                    # (tc, H+W)

    # conv2 / conv3 (1x1) + sigmoid
    a_h = jax.nn.sigmoid(
        jnp.dot(w2_ref[...], y[:, :H], preferred_element_type=jnp.float32) + b2_ref[...])
    a_w = jax.nn.sigmoid(
        jnp.dot(w3_ref[...], y[:, H:], preferred_element_type=jnp.float32) + b3_ref[...])
    # bf16 feeds keep the broadcast matmuls single-pass on the MXU (v5e);
    # identical rounding to a default-precision f32 MXU pass.
    a_h = a_h.astype(eh_ref.dtype)                                       # (C, H)
    a_w = a_w.astype(ew_ref.dtype)                                       # (C, W)

    # ---- Stage 2: chunked broadcast + multiply epilogue (lane dense) --------
    # Only (C, hw_chunk)-sized temporaries are live at once; x is re-read per
    # chunk so no full-size f32 map is ever materialized.
    def epilogue(c):
        start = c * hw_chunk
        if not isinstance(start, int):
            start = pl.multiple_of(start, hw_chunk)
        sl = pl.ds(start, hw_chunk)
        ah_full = jnp.dot(a_h, eh_ref[:, sl],
                          preferred_element_type=jnp.float32)            # (C, chunk)
        aw_full = jnp.dot(a_w, ew_ref[:, sl],
                          preferred_element_type=jnp.float32)            # (C, chunk)
        xc = x_ref[:, sl].astype(jnp.float32)
        o_ref[:, sl] = (xc * aw_full * ah_full).astype(o_ref.dtype)

    if num_chunks == 1:
        epilogue(0)
    else:
        def loop_body(c, carry):
            epilogue(c)
            return carry
        jax.lax.fori_loop(0, num_chunks, loop_body, 0, unroll=(num_chunks <= 8))


def _pool_and_broadcast_matrices(H, W, dtype=jnp.bfloat16):
    """Constant matrices for pooling and for re-broadcasting, flattened layout.

    Stored in bf16: 0/1 entries are exact; 1/W, 1/H round to <=2^-9 relative
    (exact for the power-of-two demo sizes), matching default MXU precision.
    """
    hw = H * W
    h_of = jnp.arange(hw, dtype=jnp.int32) // W                          # row of each flat pixel
    w_of = jnp.arange(hw, dtype=jnp.int32) % W                           # col of each flat pixel
    ph = (h_of[:, None] == jnp.arange(H, dtype=jnp.int32)[None, :]).astype(jnp.float32)  # (hw, H)
    pw = (w_of[:, None] == jnp.arange(W, dtype=jnp.int32)[None, :]).astype(jnp.float32)  # (hw, W)
    pool = jnp.concatenate([ph / W, pw / H], axis=1).astype(dtype)       # (hw, H+W)
    eh = ph.T.astype(dtype)                                              # (H, hw) 0/1
    ew = pw.T.astype(dtype)                                              # (W, hw) 0/1
    return pool, eh, ew


def _pick_hw_chunk(hw, target=2048):
    """Largest divisor of hw <= target, preferring 128-lane-aligned chunks."""
    if hw <= target:
        return hw
    best, best128 = 1, 0
    for c in range(1, target + 1):
        if hw % c == 0:
            best = c
            if c % 128 == 0:
                best128 = c
    if best128 >= 512:
        return best128
    return best if best >= 256 else hw


def _vmem_cap_bytes():
    """~75% of this generation's VMEM (~48 MiB v7x, ~96 MiB v5e/v6e)."""
    try:
        cap = int(pltpu.get_tpu_info().vmem_capacity_bytes)
        return max((cap * 3) // 4, 16 << 20)
    except Exception:
        return 48 << 20  # conservative: valid on every generation


def _vmem_limit_bytes(C, hw, H, W, hw_chunk, x_bytes, out_bytes, const_bytes, const_bufs):
    """VMEM budget: double-buffered x/out blocks + constants + chunked f32 temps."""
    c_p = max(C, 8)
    hw_p = ((hw + 127) // 128) * 128
    chunk_p = ((hw_chunk + 127) // 128) * 128
    io = 2 * c_p * hw_p * (x_bytes + out_bytes)                 # 2x buffers for x and out
    consts = const_bufs * 2 * hw_p * (H + W) * const_bytes      # pool + eh + ew
    small = 6 * c_p * (H + W) * 4                               # cat / y / a_h / a_w etc.
    tmps = 4 * c_p * chunk_p * 4                                # per-chunk f32 temporaries
    est = io + consts + small + tmps + (2 << 20)                # weights/biases + headroom
    cap = _vmem_cap_bytes()
    # TODO(synk): if est > cap, switch to the two-phase hw-tiled streaming
    # variant instead of clamping (whole-image block does not fit VMEM).
    return int(min(max(est, 8 << 20), cap))


def coord_attention(x, params):
    """x: (N, C, H, W) feature map (f32 or bf16). params: PyTorch-layout weights."""
    N, C, H, W = x.shape
    hw = H * W
    hw_chunk = _pick_hw_chunk(hw)
    assert hw % hw_chunk == 0

    # Fold BatchNorm2d (eval mode, running stats) into conv1.
    scale = params["gamma"] * jax.lax.rsqrt(params["var"] + BN_EPS)      # (tc, 1)
    w1f = (params["w1"] * scale).astype(jnp.float32)                     # (tc, C)
    b1f = (params["beta"] + (params["b1"] - params["mean"]) * scale).astype(jnp.float32)

    pool, eh, ew = _pool_and_broadcast_matrices(H, W, jnp.bfloat16)
    x_flat = x.reshape(N, C, hw)

    kernel = functools.partial(coord_attention_kernel, hw_chunk=hw_chunk)

    def call(single_buffer_consts):
        def const_spec(arr):
            nd = arr.ndim
            imap = lambda n, _nd=nd: (0,) * _nd
            if single_buffer_consts:
                # Constant index_map -> DMA'd once; single buffer halves residency.
                return pl.BlockSpec(arr.shape, imap, pipeline_mode=pl.Buffered(1))
            return pl.BlockSpec(arr.shape, imap)

        vmem = _vmem_limit_bytes(C, hw, H, W, hw_chunk,
                                 x.dtype.itemsize, x.dtype.itemsize,
                                 pool.dtype.itemsize,
                                 1 if single_buffer_consts else 2)

        return pl.pallas_call(
            kernel,
            out_shape=jax.ShapeDtypeStruct((N, C, hw), x.dtype),
            grid_spec=pltpu.PrefetchScalarGridSpec(
                num_scalar_prefetch=0,
                grid=(N,),
                in_specs=[
                    pl.BlockSpec((None, C, hw), lambda n: (n, 0, 0)),    # x (lane axis = H*W)
                    const_spec(pool), const_spec(eh), const_spec(ew),    # constant matrices
                    const_spec(w1f), const_spec(b1f),                    # conv1 (+BN folded)
                    const_spec(params["w2"]), const_spec(params["b2"]),  # conv2
                    const_spec(params["w3"]), const_spec(params["b3"]),  # conv3
                ],
                out_specs=pl.BlockSpec((None, C, hw), lambda n: (n, 0, 0)),
            ),
            compiler_params=pltpu.CompilerParams(
                dimension_semantics=("parallel",),
                vmem_limit_bytes=vmem,
            ),
        )(x_flat, pool, eh, ew, w1f, b1f,
          params["w2"], params["b2"], params["w3"], params["b3"])

    try:
        out_flat = call(True)
    except Exception:
        # pipeline_mode / Buffered(1) not supported by this JAX build: fall back
        # to the default (double-buffered) constant specs.
        out_flat = call(False)

    return out_flat.reshape(N, C, H, W)


def coord_attention_reference(x, p):
    """Pure-JAX reference mirroring the PyTorch forward (BN not folded)."""
    x_h = jnp.mean(x, axis=3)                                    # (N,C,H)
    x_w = jnp.mean(x, axis=2)                                    # (N,C,W)
    cat = jnp.concatenate([x_h, x_w], axis=2)                    # (N,C,H+W)
    y = jnp.einsum('tc,nck->ntk', p["w1"], cat) + p["b1"][None]
    inv = jax.lax.rsqrt(p["var"] + BN_EPS)
    y = (y - p["mean"][None]) * (p["gamma"] * inv)[None] + p["beta"][None]
    y = y * jnp.clip(y + 3.0, 0.0, 6.0) / 6.0
    H = x.shape[2]
    y_h, y_w = y[:, :, :H], y[:, :, H:]
    a_h = jax.nn.sigmoid(jnp.einsum('ct,nth->nch', p["w2"], y_h) + p["b2"][None])
    a_w = jax.nn.sigmoid(jnp.einsum('ct,ntw->ncw', p["w3"], y_w) + p["b3"][None])
    return x * a_w[:, :, None, :] * a_h[:, :, :, None]


def make_params(in_channels, out_channels, reduction=32, key=jax.random.PRNGKey(0)):
    temp_c = max(8, in_channels // reduction)
    ks = jax.random.split(key, 8)
    return {
        "w1": 0.1 * jax.random.normal(ks[0], (temp_c, in_channels), jnp.float32),
        "b1": 0.1 * jax.random.normal(ks[1], (temp_c, 1), jnp.float32),
        "gamma": 1.0 + 0.1 * jax.random.normal(ks[2], (temp_c, 1), jnp.float32),
        "beta": 0.1 * jax.random.normal(ks[3], (temp_c, 1), jnp.float32),
        "mean": 0.05 * jax.random.normal(ks[4], (temp_c, 1), jnp.float32),
        "var": 1.0 + 0.1 * jnp.abs(jax.random.normal(ks[5], (temp_c, 1), jnp.float32)),
        "w2": 0.1 * jax.random.normal(ks[6], (out_channels, temp_c), jnp.float32),
        "b2": jnp.zeros((out_channels, 1), jnp.float32),
        "w3": 0.1 * jax.random.normal(ks[7], (out_channels, temp_c), jnp.float32),
        "b3": jnp.zeros((out_channels, 1), jnp.float32),
    }


if __name__ == "__main__":
    N, C, H, W = 2, 4, 16, 16      # out_channels == in_channels (required by the residual multiply)
    key = jax.random.PRNGKey(0)
    kx, kp = jax.random.split(key)
    x = jax.random.normal(kx, (N, C, H, W), jnp.float32)
    params = make_params(C, C, reduction=32, key=kp)

    ref = coord_attention_reference(x, params)

    # f32 feature maps: MXU default precision is bf16-per-pass, so compare with
    # a slightly relaxed tolerance (same numerics as the previous passing run).
    out = jax.block_until_ready(coord_attention(x, params))
    assert out.shape == (N, C, H, W)
    assert jnp.allclose(out, ref, atol=1e-3, rtol=5e-3), "f32 mismatch vs reference"

    # bf16 feature maps end-to-end (halves HBM traffic on the mem-bound path);
    # verify against the f32 reference with a looser tolerance.
    out_bf16 = jax.block_until_ready(coord_attention(x.astype(jnp.bfloat16), params))
    assert out_bf16.dtype == jnp.bfloat16
    assert jnp.allclose(out_bf16.astype(jnp.float32), ref, atol=5e-2, rtol=5e-2), \
        "bf16 mismatch vs reference"

    print("KERNEL_OK")
</pallas_src>

<mosaic_0001>
module attributes {stable_mosaic.version = 11 : i64} {
  func.func @coord_attention_kernel(%arg0: i32, %arg1: memref<1x4x256xf32, #tpu.memory_space<vmem>>, %arg2: memref<256x32xbf16, #tpu.memory_space<vmem>>, %arg3: memref<16x256xbf16, #tpu.memory_space<vmem>>, %arg4: memref<16x256xbf16, #tpu.memory_space<vmem>>, %arg5: memref<8x4xf32, #tpu.memory_space<vmem>>, %arg6: memref<8x1xf32, #tpu.memory_space<vmem>>, %arg7: memref<4x8xf32, #tpu.memory_space<vmem>>, %arg8: memref<4x1xf32, #tpu.memory_space<vmem>>, %arg9: memref<4x8xf32, #tpu.memory_space<vmem>>, %arg10: memref<4x1xf32, #tpu.memory_space<vmem>>, %arg11: memref<1x4x256xf32, #tpu.memory_space<vmem>>) attributes {dimension_semantics = [#tpu.dimension_semantics<parallel>], iteration_bounds = array<i64: 2>, scalar_prefetch = 0 : i64, scratch_operands = 0 : i64, tpu.core_type = #tpu.core_type<tc>, window_params = [{transform_indices = @transform_0, window_bounds = array<i64: 1, 4, 256>}, {pipeline_mode = #tpu.pipeline_mode<synchronous>, transform_indices = @transform_1, window_bounds = array<i64: 256, 32>}, {pipeline_mode = #tpu.pipeline_mode<synchronous>, transform_indices = @transform_2, window_bounds = array<i64: 16, 256>}, {pipeline_mode = #tpu.pipeline_mode<synchronous>, transform_indices = @transform_3, window_bounds = array<i64: 16, 256>}, {pipeline_mode = #tpu.pipeline_mode<synchronous>, transform_indices = @transform_4, window_bounds = array<i64: 8, 4>}, {pipeline_mode = #tpu.pipeline_mode<synchronous>, transform_indices = @transform_5, window_bounds = array<i64: 8, 1>}, {pipeline_mode = #tpu.pipeline_mode<synchronous>, transform_indices = @transform_6, window_bounds = array<i64: 4, 8>}, {pipeline_mode = #tpu.pipeline_mode<synchronous>, transform_indices = @transform_7, window_bounds = array<i64: 4, 1>}, {pipeline_mode = #tpu.pipeline_mode<synchronous>, transform_indices = @transform_8, window_bounds = array<i64: 4, 8>}, {pipeline_mode = #tpu.pipeline_mode<synchronous>, transform_indices = @transform_9, window_bounds = array<i64: 4, 1>}, {transform_indices = @transform_10, window_bounds = array<i64: 1, 4, 256>}]} {
    %c0 = arith.constant 0 : index
    %c0_0 = arith.constant 0 : index
    %c0_1 = arith.constant 0 : index
    %0 = vector.load %arg1[%c0, %c0_0, %c0_1] : memref<1x4x256xf32, #tpu.memory_space<vmem>>, vector<1x4x256xf32>
    %1 = vector.shape_cast %0 : vector<1x4x256xf32> to vector<4x256xf32>
    %c0_2 = arith.constant 0 : index
    %c0_3 = arith.constant 0 : index
    %2 = vector.load %arg2[%c0_2, %c0_3] : memref<256x32xbf16, #tpu.memory_space<vmem>>, vector<256x32xbf16>
    %cst = arith.constant dense<0.000000e+00> : vector<4x32xf32>
    %3 = tpu.matmul %1, %2, %cst {dimension_numbers = #tpu.dot_dimension_numbers<[1], [0], [0], [1], [0, 0, 1, 1], [], []>} : vector<4x256xf32>, vector<256x32xbf16>, vector<4x32xf32> -> vector<4x32xf32>
    %c0_4 = arith.constant 0 : index
    %c0_5 = arith.constant 0 : index
    %4 = vector.load %arg5[%c0_4, %c0_5] : memref<8x4xf32, #tpu.memory_space<vmem>>, vector<8x4xf32>
    %cst_6 = arith.constant dense<0.000000e+00> : vector<8x32xf32>
    %5 = tpu.matmul %4, %3, %cst_6 {dimension_numbers = #tpu.dot_dimension_numbers<[1], [0], [0], [1], [0, 0, 1, 1], [], []>} : vector<8x4xf32>, vector<4x32xf32>, vector<8x32xf32> -> vector<8x32xf32>
    %c0_7 = arith.constant 0 : index
    %c0_8 = arith.constant 0 : index
    %6 = vector.load %arg6[%c0_7, %c0_8] : memref<8x1xf32, #tpu.memory_space<vmem>>, vector<8x1xf32>
    %7 = vector.broadcast %6 : vector<8x1xf32> to vector<8x32xf32>
    %8 = arith.addf %5, %7 : vector<8x32xf32>
    %cst_9 = arith.constant 3.000000e+00 : f32
    %9 = vector.broadcast %cst_9 : f32 to vector<8x32xf32>
    %10 = arith.addf %8, %9 : vector<8x32xf32>
    %cst_10 = arith.constant 0.000000e+00 : f32
    %cst_11 = arith.constant 6.000000e+00 : f32
    %11 = vector.broadcast %cst_10 : f32 to vector<8x32xf32>
    %12 = arith.maximumf %11, %10 : vector<8x32xf32>
    %13 = vector.broadcast %cst_11 : f32 to vector<8x32xf32>
    %14 = arith.minimumf %13, %12 : vector<8x32xf32>
    %15 = arith.mulf %8, %14 : vector<8x32xf32>
    %cst_12 = arith.constant 0.166666672 : f32
    %16 = vector.broadcast %cst_12 : f32 to vector<8x32xf32>
    %17 = arith.mulf %15, %16 : vector<8x32xf32>
    %c0_13 = arith.constant 0 : index
    %c0_14 = arith.constant 0 : index
    %18 = vector.load %arg7[%c0_13, %c0_14] : memref<4x8xf32, #tpu.memory_space<vmem>>, vector<4x8xf32>
    %19 = vector.extract_strided_slice %17 {offsets = [0, 0], sizes = [8, 16], strides = [1, 1]} : vector<8x32xf32> to vector<8x16xf32>
    %cst_15 = arith.constant dense<0.000000e+00> : vector<4x16xf32>
    %20 = tpu.matmul %18, %19, %cst_15 {dimension_numbers = #tpu.dot_dimension_numbers<[1], [0], [0], [1], [0, 0, 1, 1], [], []>} : vector<4x8xf32>, vector<8x16xf32>, vector<4x16xf32> -> vector<4x16xf32>
    %c0_16 = arith.constant 0 : index
    %c0_17 = arith.constant 0 : index
    %21 = vector.load %arg8[%c0_16, %c0_17] : memref<4x1xf32, #tpu.memory_space<vmem>>, vector<4x1xf32>
    %22 = vector.broadcast %21 : vector<4x1xf32> to vector<4x16xf32>
    %23 = arith.addf %20, %22 : vector<4x16xf32>
    %24 = arith.negf %23 : vector<4x16xf32>
    %25 = math.exp %24 : vector<4x16xf32>
    %cst_18 = arith.constant 1.000000e+00 : f32
    %26 = vector.broadcast %cst_18 : f32 to vector<4x16xf32>
    %27 = arith.addf %26, %25 : vector<4x16xf32>
    %28 = arith.divf %26, %27 : vector<4x16xf32>
    %c0_19 = arith.constant 0 : index
    %c0_20 = arith.constant 0 : index
    %29 = vector.load %arg9[%c0_19, %c0_20] : memref<4x8xf32, #tpu.memory_space<vmem>>, vector<4x8xf32>
    %30 = vector.extract_strided_slice %17 {offsets = [0, 16], sizes = [8, 16], strides = [1, 1]} : vector<8x32xf32> to vector<8x16xf32>
    %cst_21 = arith.constant dense<0.000000e+00> : vector<4x16xf32>
    %31 = tpu.matmul %29, %30, %cst_21 {dimension_numbers = #tpu.dot_dimension_numbers<[1], [0], [0], [1], [0, 0, 1, 1], [], []>} : vector<4x8xf32>, vector<8x16xf32>, vector<4x16xf32> -> vector<4x16xf32>
    %c0_22 = arith.constant 0 : index
    %c0_23 = arith.constant 0 : index
    %32 = vector.load %arg10[%c0_22, %c0_23] : memref<4x1xf32, #tpu.memory_space<vmem>>, vector<4x1xf32>
    %33 = vector.broadcast %32 : vector<4x1xf32> to vector<4x16xf32>
    %34 = arith.addf %31, %33 : vector<4x16xf32>
    %35 = arith.negf %34 : vector<4x16xf32>
    %36 = math.exp %35 : vector<4x16xf32>
    %cst_24 = arith.constant 1.000000e+00 : f32
    %37 = vector.broadcast %cst_24 : f32 to vector<4x16xf32>
    %38 = arith.addf %37, %36 : vector<4x16xf32>
    %39 = arith.divf %37, %38 : vector<4x16xf32>
    %40 = arith.truncf %28 : vector<4x16xf32> to vector<4x16xbf16>
    %41 = arith.truncf %39 : vector<4x16xf32> to vector<4x16xbf16>
    %c0_25 = arith.constant 0 : index
    %c0_26 = arith.constant 0 : index
    %42 = vector.load %arg3[%c0_25, %c0_26] : memref<16x256xbf16, #tpu.memory_space<vmem>>, vector<16x256xbf16>
    %cst_27 = arith.constant dense<0.000000e+00> : vector<4x256xf32>
    %43 = tpu.matmul %40, %42, %cst_27 {dimension_numbers = #tpu.dot_dimension_numbers<[1], [0], [0], [1], [0, 0, 1, 1], [], []>} : vector<4x16xbf16>, vector<16x256xbf16>, vector<4x256xf32> -> vector<4x256xf32>
    %c0_28 = arith.constant 0 : index
    %c0_29 = arith.constant 0 : index
    %44 = vector.load %arg4[%c0_28, %c0_29] : memref<16x256xbf16, #tpu.memory_space<vmem>>, vector<16x256xbf16>
    %cst_30 = arith.constant dense<0.000000e+00> : vector<4x256xf32>
    %45 = tpu.matmul %41, %44, %cst_30 {dimension_numbers = #tpu.dot_dimension_numbers<[1], [0], [0], [1], [0, 0, 1, 1], [], []>} : vector<4x16xbf16>, vector<16x256xbf16>, vector<4x256xf32> -> vector<4x256xf32>
    %c0_31 = arith.constant 0 : index
    %c0_32 = arith.constant 0 : index
    %c0_33 = arith.constant 0 : index
    %46 = vector.load %arg1[%c0_31, %c0_32, %c0_33] : memref<1x4x256xf32, #tpu.memory_space<vmem>>, vector<1x4x256xf32>
    %47 = vector.shape_cast %46 : vector<1x4x256xf32> to vector<4x256xf32>
    %48 = arith.mulf %47, %45 : vector<4x256xf32>
    %49 = arith.mulf %48, %43 : vector<4x256xf32>
    %c0_34 = arith.constant 0 : index
    %c0_35 = arith.constant 0 : index
    %c0_36 = arith.constant 0 : index
    %50 = vector.load %arg11[%c0_34, %c0_35, %c0_36] : memref<1x4x256xf32, #tpu.memory_space<vmem>>, vector<1x4x256xf32>
    %51 = vector.shape_cast %50 : vector<1x4x256xf32> to vector<4x256xf32>
    %52 = vector.shape_cast %49 : vector<4x256xf32> to vector<1x4x256xf32>
    tpu.vector_store %arg11[%c0_34, %c0_35, %c0_36], %52 {strides = array<i32>} : memref<1x4x256xf32, #tpu.memory_space<vmem>>, vector<1x4x256xf32>,
    return
  }
  func.func @transform_0(%arg0: i32) -> (i32, i32, i32) {
    %c0_i32 = arith.constant 0 : i32
    %c0_i32_0 = arith.constant 0 : i32
    %c0_i32_1 = arith.constant 0 : i32
    return %arg0, %c0_i32, %c0_i32_0 : i32, i32, i32
  }
  func.func @transform_1(%arg0: i32) -> (i32, i32) {
    %c0_i32 = arith.constant 0 : i32
    %c0_i32_0 = arith.constant 0 : i32
    %c0_i32_1 = arith.constant 0 : i32
    return %c0_i32, %c0_i32_0 : i32, i32
  }
  func.func @transform_2(%arg0: i32) -> (i32, i32) {
    %c0_i32 = arith.constant 0 : i32
    %c0_i32_0 = arith.constant 0 : i32
    %c0_i32_1 = arith.constant 0 : i32
    return %c0_i32, %c0_i32_0 : i32, i32
  }
  func.func @transform_3(%arg0: i32) -> (i32, i32) {
    %c0_i32 = arith.constant 0 : i32
    %c0_i32_0 = arith.constant 0 : i32
    %c0_i32_1 = arith.constant 0 : i32
    return %c0_i32, %c0_i32_0 : i32, i32
  }
  func.func @transform_4(%arg0: i32) -> (i32, i32) {
    %c0_i32 = arith.constant 0 : i32
    %c0_i32_0 = arith.constant 0 : i32
    %c0_i32_1 = arith.constant 0 : i32
    return %c0_i32, %c0_i32_0 : i32, i32
  }
  func.func @transform_5(%arg0: i32) -> (i32, i32) {
    %c0_i32 = arith.constant 0 : i32
    %c0_i32_0 = arith.constant 0 : i32
    %c0_i32_1 = arith.constant 0 : i32
    return %c0_i32, %c0_i32_0 : i32, i32
  }
  func.func @transform_6(%arg0: i32) -> (i32, i32) {
    %c0_i32 = arith.constant 0 : i32
    %c0_i32_0 = arith.constant 0 : i32
    %c0_i32_1 = arith.constant 0 : i32
    return %c0_i32, %c0_i32_0 : i32, i32
  }
  func.func @transform_7(%arg0: i32) -> (i32, i32) {
    %c0_i32 = arith.constant 0 : i32
    %c0_i32_0 = arith.constant 0 : i32
    %c0_i32_1 = arith.constant 0 : i32
    return %c0_i32, %c0_i32_0 : i32, i32
  }
  func.func @transform_8(%arg0: i32) -> (i32, i32) {
    %c0_i32 = arith.constant 0 : i32
    %c0_i32_0 = arith.constant 0 : i32
    %c0_i32_1 = arith.constant 0 : i32
    return %c0_i32, %c0_i32_0 : i32, i32
  }
  func.func @transform_9(%arg0: i32) -> (i32, i32) {
    %c0_i32 = arith.constant 0 : i32
    %c0_i32_0 = arith.constant 0 : i32
    %c0_i32_1 = arith.constant 0 : i32
    return %c0_i32, %c0_i32_0 : i32, i32
  }
  func.func @transform_10(%arg0: i32) -> (i32, i32, i32) {
    %c0_i32 = arith.constant 0 : i32
    %c0_i32_0 = arith.constant 0 : i32
    %c0_i32_1 = arith.constant 0 : i32
    return %arg0, %c0_i32, %c0_i32_0 : i32, i32, i32
  }
}

module attributes {stable_mosaic.version = 11 : i64} {
  func.func @coord_attention_kernel(%arg0: i32, %arg1: memref<1x4x256xf32, #tpu.memory_space<vmem>>, %arg2: memref<256x32xbf16, #tpu.memory_space<vmem>>, %arg3: memref<16x256xbf16, #tpu.memory_space<vmem>>, %arg4: memref<16x256xbf16, #tpu.memory_space<vmem>>, %arg5: memref<8x4xf32, #tpu.memory_space<vmem>>, %arg6: memref<8x1xf32, #tpu.memory_space<vmem>>, %arg7: memref<4x8xf32, #tpu.memory_space<vmem>>, %arg8: memref<4x1xf32, #tpu.memory_space<vmem>>, %arg9: memref<4x8xf32, #tpu.memory_space<vmem>>, %arg10: memref<4x1xf32, #tpu.memory_space<vmem>>, %arg11: memref<1x4x256xf32, #tpu.memory_space<vmem>>) attributes {dimension_semantics = [#tpu.dimension_semantics<parallel>], iteration_bounds = array<i64: 2>, scalar_prefetch = 0 : i64, scratch_operands = 0 : i64, tpu.core_type = #tpu.core_type<tc>, window_params = [{transform_indices = @transform_0, window_bounds = array<i64: 1, 4, 256>}, {pipeline_mode = #tpu.pipeline_mode<synchronous>, transform_indices = @transform_1, window_bounds = array<i64: 256, 32>}, {pipeline_mode = #tpu.pipeline_mode<synchronous>, transform_indices = @transform_2, window_bounds = array<i64: 16, 256>}, {pipeline_mode = #tpu.pipeline_mode<synchronous>, transform_indices = @transform_3, window_bounds = array<i64: 16, 256>}, {pipeline_mode = #tpu.pipeline_mode<synchronous>, transform_indices = @transform_4, window_bounds = array<i64: 8, 4>}, {pipeline_mode = #tpu.pipeline_mode<synchronous>, transform_indices = @transform_5, window_bounds = array<i64: 8, 1>}, {pipeline_mode = #tpu.pipeline_mode<synchronous>, transform_indices = @transform_6, window_bounds = array<i64: 4, 8>}, {pipeline_mode = #tpu.pipeline_mode<synchronous>, transform_indices = @transform_7, window_bounds = array<i64: 4, 1>}, {pipeline_mode = #tpu.pipeline_mode<synchronous>, transform_indices = @transform_8, window_bounds = array<i64: 4, 8>}, {pipeline_mode = #tpu.pipeline_mode<synchronous>, transform_indices = @transform_9, window_bounds = array<i64: 4, 1>}, {transform_indices = @transform_10, window_bounds = array<i64: 1, 4, 256>}]} {
    %c0 = arith.constant 0 : index
    %c0_0 = arith.constant 0 : index
    %c0_1 = arith.constant 0 : index
    %0 = vector.load %arg1[%c0, %c0_0, %c0_1] : memref<1x4x256xf32, #tpu.memory_space<vmem>>, vector<1x4x256xf32>
    %1 = vector.shape_cast %0 : vector<1x4x256xf32> to vector<4x256xf32>
    %c0_2 = arith.constant 0 : index
    %c0_3 = arith.constant 0 : index
    %2 = vector.load %arg2[%c0_2, %c0_3] : memref<256x32xbf16, #tpu.memory_space<vmem>>, vector<256x32xbf16>
    %cst = arith.constant dense<0.000000e+00> : vector<4x32xf32>
    %3 = tpu.matmul %1, %2, %cst {dimension_numbers = #tpu.dot_dimension_numbers<[1], [0], [0], [1], [0, 0, 1, 1], [], []>} : vector<4x256xf32>, vector<256x32xbf16>, vector<4x32xf32> -> vector<4x32xf32>
    %c0_4 = arith.constant 0 : index
    %c0_5 = arith.constant 0 : index
    %4 = vector.load %arg5[%c0_4, %c0_5] : memref<8x4xf32, #tpu.memory_space<vmem>>, vector<8x4xf32>
    %cst_6 = arith.constant dense<0.000000e+00> : vector<8x32xf32>
    %5 = tpu.matmul %4, %3, %cst_6 {dimension_numbers = #tpu.dot_dimension_numbers<[1], [0], [0], [1], [0, 0, 1, 1], [], []>} : vector<8x4xf32>, vector<4x32xf32>, vector<8x32xf32> -> vector<8x32xf32>
    %c0_7 = arith.constant 0 : index
    %c0_8 = arith.constant 0 : index
    %6 = vector.load %arg6[%c0_7, %c0_8] : memref<8x1xf32, #tpu.memory_space<vmem>>, vector<8x1xf32>
    %7 = vector.broadcast %6 : vector<8x1xf32> to vector<8x32xf32>
    %8 = arith.addf %5, %7 : vector<8x32xf32>
    %cst_9 = arith.constant 3.000000e+00 : f32
    %9 = vector.broadcast %cst_9 : f32 to vector<8x32xf32>
    %10 = arith.addf %8, %9 : vector<8x32xf32>
    %cst_10 = arith.constant 0.000000e+00 : f32
    %cst_11 = arith.constant 6.000000e+00 : f32
    %11 = vector.broadcast %cst_10 : f32 to vector<8x32xf32>
    %12 = arith.maximumf %11, %10 : vector<8x32xf32>
    %13 = vector.broadcast %cst_11 : f32 to vector<8x32xf32>
    %14 = arith.minimumf %13, %12 : vector<8x32xf32>
    %15 = arith.mulf %8, %14 : vector<8x32xf32>
    %cst_12 = arith.constant 0.166666672 : f32
    %16 = vector.broadcast %cst_12 : f32 to vector<8x32xf32>
    %17 = arith.mulf %15, %16 : vector<8x32xf32>
    %c0_13 = arith.constant 0 : index
    %c0_14 = arith.constant 0 : index
    %18 = vector.load %arg7[%c0_13, %c0_14] : memref<4x8xf32, #tpu.memory_space<vmem>>, vector<4x8xf32>
    %19 = vector.extract_strided_slice %17 {offsets = [0, 0], sizes = [8, 16], strides = [1, 1]} : vector<8x32xf32> to vector<8x16xf32>
    %cst_15 = arith.constant dense<0.000000e+00> : vector<4x16xf32>
    %20 = tpu.matmul %18, %19, %cst_15 {dimension_numbers = #tpu.dot_dimension_numbers<[1], [0], [0], [1], [0, 0, 1, 1], [], []>} : vector<4x8xf32>, vector<8x16xf32>, vector<4x16xf32> -> vector<4x16xf32>
    %c0_16 = arith.constant 0 : index
    %c0_17 = arith.constant 0 : index
    %21 = vector.load %arg8[%c0_16, %c0_17] : memref<4x1xf32, #tpu.memory_space<vmem>>, vector<4x1xf32>
    %22 = vector.broadcast %21 : vector<4x1xf32> to vector<4x16xf32>
    %23 = arith.addf %20, %22 : vector<4x16xf32>
    %24 = arith.negf %23 : vector<4x16xf32>
    %25 = math.exp %24 : vector<4x16xf32>
    %cst_18 = arith.constant 1.000000e+00 : f32
    %26 = vector.broadcast %cst_18 : f32 to vector<4x16xf32>
    %27 = arith.addf %26, %25 : vector<4x16xf32>
    %28 = arith.divf %26, %27 : vector<4x16xf32>
    %c0_19 = arith.constant 0 : index
    %c0_20 = arith.constant 0 : index
    %29 = vector.load %arg9[%c0_19, %c0_20] : memref<4x8xf32, #tpu.memory_space<vmem>>, vector<4x8xf32>
    %30 = vector.extract_strided_slice %17 {offsets = [0, 16], sizes = [8, 16], strides = [1, 1]} : vector<8x32xf32> to vector<8x16xf32>
    %cst_21 = arith.constant dense<0.000000e+00> : vector<4x16xf32>
    %31 = tpu.matmul %29, %30, %cst_21 {dimension_numbers = #tpu.dot_dimension_numbers<[1], [0], [0], [1], [0, 0, 1, 1], [], []>} : vector<4x8xf32>, vector<8x16xf32>, vector<4x16xf32> -> vector<4x16xf32>
    %c0_22 = arith.constant 0 : index
    %c0_23 = arith.constant 0 : index
    %32 = vector.load %arg10[%c0_22, %c0_23] : memref<4x1xf32, #tpu.memory_space<vmem>>, vector<4x1xf32>
    %33 = vector.broadcast %32 : vector<4x1xf32> to vector<4x16xf32>
    %34 = arith.addf %31, %33 : vector<4x16xf32>
    %35 = arith.negf %34 : vector<4x16xf32>
    %36 = math.exp %35 : vector<4x16xf32>
    %cst_24 = arith.constant 1.000000e+00 : f32
    %37 = vector.broadcast %cst_24 : f32 to vector<4x16xf32>
    %38 = arith.addf %37, %36 : vector<4x16xf32>
    %39 = arith.divf %37, %38 : vector<4x16xf32>
    %40 = arith.truncf %28 : vector<4x16xf32> to vector<4x16xbf16>
    %41 = arith.truncf %39 : vector<4x16xf32> to vector<4x16xbf16>
    %c0_25 = arith.constant 0 : index
    %c0_26 = arith.constant 0 : index
    %42 = vector.load %arg3[%c0_25, %c0_26] : memref<16x256xbf16, #tpu.memory_space<vmem>>, vector<16x256xbf16>
    %cst_27 = arith.constant dense<0.000000e+00> : vector<4x256xf32>
    %43 = tpu.matmul %40, %42, %cst_27 {dimension_numbers = #tpu.dot_dimension_numbers<[1], [0], [0], [1], [0, 0, 1, 1], [], []>} : vector<4x16xbf16>, vector<16x256xbf16>, vector<4x256xf32> -> vector<4x256xf32>
    %c0_28 = arith.constant 0 : index
    %c0_29 = arith.constant 0 : index
    %44 = vector.load %arg4[%c0_28, %c0_29] : memref<16x256xbf16, #tpu.memory_space<vmem>>, vector<16x256xbf16>
    %cst_30 = arith.constant dense<0.000000e+00> : vector<4x256xf32>
    %45 = tpu.matmul %41, %44, %cst_30 {dimension_numbers = #tpu.dot_dimension_numbers<[1], [0], [0], [1], [0, 0, 1, 1], [], []>} : vector<4x16xbf16>, vector<16x256xbf16>, vector<4x256xf32> -> vector<4x256xf32>
    %c0_31 = arith.constant 0 : index
    %c0_32 = arith.constant 0 : index
    %c0_33 = arith.constant 0 : index
    %46 = vector.load %arg1[%c0_31, %c0_32, %c0_33] : memref<1x4x256xf32, #tpu.memory_space<vmem>>, vector<1x4x256xf32>
    %47 = vector.shape_cast %46 : vector<1x4x256xf32> to vector<4x256xf32>
    %48 = arith.mulf %47, %45 : vector<4x256xf32>
    %49 = arith.mulf %48, %43 : vector<4x256xf32>
    %c0_34 = arith.constant 0 : index
    %c0_35 = arith.constant 0 : index
    %c0_36 = arith.constant 0 : index
    %50 = vector.load %arg11[%c0_34, %c0_35, %c0_36] : memref<1x4x256xf32, #tpu.memory_space<vmem>>, vector<1x4x256xf32>
    %51 = vector.shape_cast %50 : vector<1x4x256xf32> to vector<4x256xf32>
    %52 = vector.shape_cast %49 : vector<4x256xf32> to vector<1x4x256xf32>
    tpu.vector_store %arg11[%c0_34, %c0_35, %c0_36], %52 {strides = array<i32>} : memref<1x4x256xf32, #tpu.memory_space<vmem>>, vector<1x4x256xf32>,
    return
  }
  func.func @transform_0(%arg0: i32) -> (i32, i32, i32) {
    %c0_i32 = arith.constant 0 : i32
    %c0_i32_0 = arith.constant 0 : i32
    %c0_i32_1 = arith.constant 0 : i32
    return %arg0, %c0_i32, %c0_i32_0 : i32, i32, i32
  }
  func.func @transform_1(%arg0: i32) -> (i32, i32) {
    %c0_i32 = arith.constant 0 : i32
    %c0_i32_0 = arith.constant 0 : i32
    %c0_i32_1 = arith.constant 0 : i32
    return %c0_i32, %c0_i32_0 : i32, i32
  }
  func.func @transform_2(%arg0: i32) -> (i32, i32) {
    %c0_i32 = arith.constant 0 : i32
    %c0_i32_0 = arith.constant 0 : i32
    %c0_i32_1 = arith.constant 0 : i32
    return %c0_i32, %c0_i32_0 : i32, i32
  }
  func.func @transform_3(%arg0: i32) -> (i32, i32) {
    %c0_i32 = arith.constant 0 : i32
    %c0_i32_0 = arith.constant 0 : i32
    %c0_i32_1 = arith.constant 0 : i32
    return %c0_i32, %c0_i32_0 : i32, i32
  }
  func.func @transform_4(%arg0: i32) -> (i32, i32) {
    %c0_i32 = arith.constant 0 : i32
    %c0_i32_0 = arith.constant 0 : i32
    %c0_i32_1 = arith.constant 0 : i32
    return %c0_i32, %c0_i32_0 : i32, i32
  }
  func.func @transform_5(%arg0: i32) -> (i32, i32) {
    %c0_i32 = arith.constant 0 : i32
    %c0_i32_0 = arith.constant 0 : i32
    %c0_i32_1 = arith.constant 0 : i32
    return %c0_i32, %c0_i32_0 : i32, i32
  }
  func.func @transform_6(%arg0: i32) -> (i32, i32) {
    %c0_i32 = arith.constant 0 : i32
    %c0_i32_0 = arith.constant 0 : i32
    %c0_i32_1 = arith.constant 0 : i32
    return %c0_i32, %c0_i32_0 : i32, i32
  }
  func.func @transform_7(%arg0: i32) -> (i32, i32) {
    %c0_i32 = arith.constant 0 : i32
    %c0_i32_0 = arith.constant 0 : i32
    %c0_i32_1 = arith.constant 0 : i32
    return %c0_i32, %c0_i32_0 : i32, i32
  }
  func.func @transform_8(%arg0: i32) -> (i32, i32) {
    %c0_i32 = arith.constant 0 : i32
    %c0_i32_0 = arith.constant 0 : i32
    %c0_i32_1 = arith.constant 0 : i32
    return %c0_i32, %c0_i32_0 : i32, i32
  }
  func.func @transform_9(%arg0: i32) -> (i32, i32) {
    %c0_i32 = arith.constant 0 : i32
    %c0_i32_0 = arith.constant 0 : i32
    %c0_i32_1 = arith.constant 0 : i32
    return %c0_i32, %c0_i32_0 : i32, i32
  }
  func.func @transform_10(%arg0: i32) -> (i32, i32, i32) {
    %c0_i32 = arith.constant 0 : i32
    %c0_i32_0 = arith.constant 0 : i32
    %c0_i32_1 = arith.constant 0 : i32
    return %arg0, %c0_i32, %c0_i32_0 : i32, i32, i32
  }
}

</mosaic_0001>

<llo_original>
// kernel: tpu_custom_call.1
$region0: #{tpu_custom_call.1}
  #allocation0 [shape = 'u32[]', space=smem, size = 0x4, offset = 0x4, fixed_abs, tag = 'smem constant byte address 0x4 - core index']
  #allocation1 [shape = 'u32[144,128]{1,0:T(1,128)}', space=vmem, size = 0x12000, scoped, tag = 'internal scratch']
  %s0 = inlined_call_operand.vmem [shape: f32[2,4,256], index: 0, kind: input, shape index: {}]
  %s1 = inlined_call_operand.vmem [shape: bf16[256,32], index: 1, kind: input, shape index: {}]
  %s2 = inlined_call_operand.vmem [shape: bf16[16,256], index: 2, kind: input, shape index: {}]
  %s3 = inlined_call_operand.vmem [shape: bf16[16,256], index: 3, kind: input, shape index: {}]
  %s4 = inlined_call_operand.vmem [shape: f32[8,4], index: 4, kind: input, shape index: {}]
  %s5 = inlined_call_operand.vmem [shape: f32[8,1], index: 5, kind: input, shape index: {}]
  %s6 = inlined_call_operand.vmem [shape: f32[4,8], index: 6, kind: input, shape index: {}]
  %s7 = inlined_call_operand.vmem [shape: f32[4,1], index: 7, kind: input, shape index: {}]
  %s8 = inlined_call_operand.vmem [shape: f32[4,8], index: 8, kind: input, shape index: {}]
  %s9 = inlined_call_operand.vmem [shape: f32[4,1], index: 9, kind: input, shape index: {}]
  %s10 = inlined_call_operand.hbm [shape: f32[2,4,256], index: 10, kind: output, shape index: {}]
  %s11 = sld [smem:[#allocation0]]
  $region73: #{tpu_custom_call.1} parent=0
    _
  %s13 = ssub.s32 1, %s11
  %s14 = scalar_select 0, %s13, %s11
  $region1: #{tpu_custom_call.1} parent=0
    #allocation2 [shape = 'u8[8192]{0}', space=vmem, size = 0x2000, scoped, tag = 'output window, operand 0']
    #allocation3 [shape = 's32[2]{0}', space=sflag, size = 0x8, scoped, tag = 'scoped memory for tpu_custom_call.1']
    %15 = vsyncpa [#allocation3], 0
    %s16 = scalar_lea.sflag [#allocation3], 1
    %17 = vsyncpa %s16, 0
    loop: start=0, step=1, limit=4
    $region2: #{tpu_custom_call.1} parent=1 // loop_pre_header
      _
    $region3: #{tpu_custom_call.1} parent=1 // loop_header
      %s19 = sphi 0, %s23
      %p20 = scmp.ge.s32.totalorder %s19, 4
      %s29 = sphi 0, %s31
      %s32 = sphi 0, %s29
      %s33 = sphi 0, %s32
      %s49 = sphi 0, %s33
      %s53 = sphi 0, %s53
      %s55 = sphi 0, %s53
      %s56 = sphi 0, %s55
      %s70 = sphi 0, %s56
      %s74 = sphi 0, %s74
      %s76 = sphi 0, %s74
      %s77 = sphi 0, %s76
      %s91 = sphi 0, %s77
      %s95 = sphi 0, %s95
      %s97 = sphi 0, %s95
      %s98 = sphi 0, %s97
      %s112 = sphi 0, %s98
      %s116 = sphi 0, %s116
      %s118 = sphi 0, %s116
      %s119 = sphi 0, %s118
      %s133 = sphi 0, %s119
      %s137 = sphi 0, %s137
      %s139 = sphi 0, %s137
      %s140 = sphi 0, %s139
      %s154 = sphi 0, %s140
      %s158 = sphi 0, %s158
      %s160 = sphi 0, %s158
      %s161 = sphi 0, %s160
      %s175 = sphi 0, %s161
      %s179 = sphi 0, %s179
      %s181 = sphi 0, %s179
      %s182 = sphi 0, %s181
      %s196 = sphi 0, %s182
      %s200 = sphi 0, %s200
      %s202 = sphi 0, %s200
      %s203 = sphi 0, %s202
      %s217 = sphi 0, %s203
      %s221 = sphi 0, %s221
      %s223 = sphi 0, %s221
      %s224 = sphi 0, %s223
      %s238 = sphi 0, %s224
      %s244 = sphi 0, %s246
      %s247 = sphi 0, %s244
      %s248 = sphi 0, %s247
      %s264 = sphi 0, %s248
    $region4: #{tpu_custom_call.1} parent=1 // loop_header_branch
      %22 = sbr.rel (%p20) target = $region8
    $region5: #{tpu_custom_call.1} parent=1 // loop_body
      %s24 = ssub.s32 %s19, 1
      %s25 = ssub.s32 %s19, 2
      %s26 = sadd.s32 %s19, 1
      %s27 = ssub.s32 %s19, %s26
      %p28 = scmp.eq.s32.totalorder %s27, 0
      %s30 = sadd.s32 %s29, 1
      %s31 = scalar_select %p28, %s29, %s30
      %p34 = pneg %p28
      %p35 = scmp.eq.s32.totalorder %s19, 1
      %p36 = por %p34, %p35
      %p37 = scmp.ne.s32.totalorder %s29, %s32
      %p38 = scmp.eq.s32.totalorder %s19, 0
      %p39 = por %p37, %p38
      %p40 = scmp.ne.s32.totalorder %s29, %s32
      %p41 = scmp.eq.s32.totalorder %s24, 1
      %p42 = por %p40, %p41
      %p43 = scmp.ne.s32.totalorder %s32, %s33
      %p44 = scmp.eq.s32.totalorder %s24, 0
      %p45 = por %p43, %p44
      %p46 = scmp.ne.s32.totalorder %s32, %s33
      %p47 = scmp.eq.s32.totalorder %s25, 1
      %p48 = por %p46, %p47
      %p50 = scmp.ne.s32.totalorder %s33, %s49
      %p51 = scmp.eq.s32.totalorder %s25, 0
      %p52 = por %p50, %p51
      %s54 = sadd.s32 %s53, 1
      %p57 = scmp.eq.s32.totalorder %s19, 1
      %p58 = scmp.ne.s32.totalorder %s53, %s55
      %p59 = scmp.eq.s32.totalorder %s19, 0
      %p60 = por %p58, %p59
      %p61 = scmp.ne.s32.totalorder %s53, %s55
      %p62 = scmp.eq.s32.totalorder %s24, 1
      %p63 = por %p61, %p62
      %p64 = scmp.ne.s32.totalorder %s55, %s56
      %p65 = scmp.eq.s32.totalorder %s24, 0
      %p66 = por %p64, %p65
      %p67 = scmp.ne.s32.totalorder %s55, %s56
      %p68 = scmp.eq.s32.totalorder %s25, 1
      %p69 = por %p67, %p68
      %p71 = scmp.ne.s32.totalorder %s56, %s70
      %p72 = scmp.eq.s32.totalorder %s25, 0
      %p73 = por %p71, %p72
      %s75 = sadd.s32 %s74, 1
      %p78 = scmp.eq.s32.totalorder %s19, 1
      %p79 = scmp.ne.s32.totalorder %s74, %s76
      %p80 = scmp.eq.s32.totalorder %s19, 0
      %p81 = por %p79, %p80
      %p82 = scmp.ne.s32.totalorder %s74, %s76
      %p83 = scmp.eq.s32.totalorder %s24, 1
      %p84 = por %p82, %p83
      %p85 = scmp.ne.s32.totalorder %s76, %s77
      %p86 = scmp.eq.s32.totalorder %s24, 0
      %p87 = por %p85, %p86
      %p88 = scmp.ne.s32.totalorder %s76, %s77
      %p89 = scmp.eq.s32.totalorder %s25, 1
      %p90 = por %p88, %p89
      %p92 = scmp.ne.s32.totalorder %s77, %s91
      %p93 = scmp.eq.s32.totalorder %s25, 0
      %p94 = por %p92, %p93
      %s96 = sadd.s32 %s95, 1
      %p99 = scmp.eq.s32.totalorder %s19, 1
      %p100 = scmp.ne.s32.totalorder %s95, %s97
      %p101 = scmp.eq.s32.totalorder %s19, 0
      %p102 = por %p100, %p101
      %p103 = scmp.ne.s32.totalorder %s95, %s97
      %p104 = scmp.eq.s32.totalorder %s24, 1
      %p105 = por %p103, %p104
      %p106 = scmp.ne.s32.totalorder %s97, %s98
      %p107 = scmp.eq.s32.totalorder %s24, 0
      %p108 = por %p106, %p107
      %p109 = scmp.ne.s32.totalorder %s97, %s98
      %p110 = scmp.eq.s32.totalorder %s25, 1
      %p111 = por %p109, %p110
      %p113 = scmp.ne.s32.totalorder %s98, %s112
      %p114 = scmp.eq.s32.totalorder %s25, 0
      %p115 = por %p113, %p114
      %s117 = sadd.s32 %s116, 1
      %p120 = scmp.eq.s32.totalorder %s19, 1
      %p121 = scmp.ne.s32.totalorder %s116, %s118
      %p122 = scmp.eq.s32.totalorder %s19, 0
      %p123 = por %p121, %p122
      %p124 = scmp.ne.s32.totalorder %s116, %s118
      %p125 = scmp.eq.s32.totalorder %s24, 1
      %p126 = por %p124, %p125
      %p127 = scmp.ne.s32.totalorder %s118, %s119
      %p128 = scmp.eq.s32.totalorder %s24, 0
      %p129 = por %p127, %p128
      %p130 = scmp.ne.s32.totalorder %s118, %s119
      %p131 = scmp.eq.s32.totalorder %s25, 1
      %p132 = por %p130, %p131
      %p134 = scmp.ne.s32.totalorder %s119, %s133
      %p135 = scmp.eq.s32.totalorder %s25, 0
      %p136 = por %p134, %p135
      %s138 = sadd.s32 %s137, 1
      %p141 = scmp.eq.s32.totalorder %s19, 1
      %p142 = scmp.ne.s32.totalorder %s137, %s139
      %p143 = scmp.eq.s32.totalorder %s19, 0
      %p144 = por %p142, %p143
      %p145 = scmp.ne.s32.totalorder %s137, %s139
      %p146 = scmp.eq.s32.totalorder %s24, 1
      %p147 = por %p145, %p146
      %p148 = scmp.ne.s32.totalorder %s139, %s140
      %p149 = scmp.eq.s32.totalorder %s24, 0
      %p150 = por %p148, %p149
      %p151 = scmp.ne.s32.totalorder %s139, %s140
      %p152 = scmp.eq.s32.totalorder %s25, 1
      %p153 = por %p151, %p152
      %p155 = scmp.ne.s32.totalorder %s140, %s154
      %p156 = scmp.eq.s32.totalorder %s25, 0
      %p157 = por %p155, %p156
      %s159 = sadd.s32 %s158, 1
      %p162 = scmp.eq.s32.totalorder %s19, 1
      %p163 = scmp.ne.s32.totalorder %s158, %s160
      %p164 = scmp.eq.s32.totalorder %s19, 0
      %p165 = por %p163, %p164
      %p166 = scmp.ne.s32.totalorder %s158, %s160
      %p167 = scmp.eq.s32.totalorder %s24, 1
      %p168 = por %p166, %p167
      %p169 = scmp.ne.s32.totalorder %s160, %s161
      %p170 = scmp.eq.s32.totalorder %s24, 0
      %p171 = por %p169, %p170
      %p172 = scmp.ne.s32.totalorder %s160, %s161
      %p173 = scmp.eq.s32.totalorder %s25, 1
      %p174 = por %p172, %p173
      %p176 = scmp.ne.s32.totalorder %s161, %s175
      %p177 = scmp.eq.s32.totalorder %s25, 0
      %p178 = por %p176, %p177
      %s180 = sadd.s32 %s179, 1
      %p183 = scmp.eq.s32.totalorder %s19, 1
      %p184 = scmp.ne.s32.totalorder %s179, %s181
      %p185 = scmp.eq.s32.totalorder %s19, 0
      %p186 = por %p184, %p185
      %p187 = scmp.ne.s32.totalorder %s179, %s181
      %p188 = scmp.eq.s32.totalorder %s24, 1
      %p189 = por %p187, %p188
      %p190 = scmp.ne.s32.totalorder %s181, %s182
      %p191 = scmp.eq.s32.totalorder %s24, 0
      %p192 = por %p190, %p191
      %p193 = scmp.ne.s32.totalorder %s181, %s182
      %p194 = scmp.eq.s32.totalorder %s25, 1
      %p195 = por %p193, %p194
      %p197 = scmp.ne.s32.totalorder %s182, %s196
      %p198 = scmp.eq.s32.totalorder %s25, 0
      %p199 = por %p197, %p198
      %s201 = sadd.s32 %s200, 1
      %p204 = scmp.eq.s32.totalorder %s19, 1
      %p205 = scmp.ne.s32.totalorder %s200, %s202
      %p206 = scmp.eq.s32.totalorder %s19, 0
      %p207 = por %p205, %p206
      %p208 = scmp.ne.s32.totalorder %s200, %s202
      %p209 = scmp.eq.s32.totalorder %s24, 1
      %p210 = por %p208, %p209
      %p211 = scmp.ne.s32.totalorder %s202, %s203
      %p212 = scmp.eq.s32.totalorder %s24, 0
      %p213 = por %p211, %p212
      %p214 = scmp.ne.s32.totalorder %s202, %s203
      %p215 = scmp.eq.s32.totalorder %s25, 1
      %p216 = por %p214, %p215
      %p218 = scmp.ne.s32.totalorder %s203, %s217
      %p219 = scmp.eq.s32.totalorder %s25, 0
      %p220 = por %p218, %p219
      %s222 = sadd.s32 %s221, 1
      %p225 = scmp.eq.s32.totalorder %s19, 1
      %p226 = scmp.ne.s32.totalorder %s221, %s223
      %p227 = scmp.eq.s32.totalorder %s19, 0
      %p228 = por %p226, %p227
      %p229 = scmp.ne.s32.totalorder %s221, %s223
      %p230 = scmp.eq.s32.totalorder %s24, 1
      %p231 = por %p229, %p230
      %p232 = scmp.ne.s32.totalorder %s223, %s224
      %p233 = scmp.eq.s32.totalorder %s24, 0
      %p234 = por %p232, %p233
      %p235 = scmp.ne.s32.totalorder %s223, %s224
      %p236 = scmp.eq.s32.totalorder %s25, 1
      %p237 = por %p235, %p236
      %p239 = scmp.ne.s32.totalorder %s224, %s238
      %p240 = scmp.eq.s32.totalorder %s25, 0
      %p241 = por %p239, %p240
      %s242 = ssub.s32 %s19, %s26
      %p243 = scmp.eq.s32.totalorder %s242, 0
      %s245 = sadd.s32 %s244, 1
      %s246 = scalar_select %p243, %s244, %s245
      %p249 = pneg %p243
      %p250 = scmp.eq.s32.totalorder %s19, 1
      %p251 = por %p249, %p250
      %p252 = scmp.ne.s32.totalorder %s244, %s247
      %p253 = scmp.eq.s32.totalorder %s19, 0
      %p254 = por %p252, %p253
      %p255 = scmp.ne.s32.totalorder %s244, %s247
      %p256 = scmp.eq.s32.totalorder %s24, 1
      %p257 = por %p255, %p256
      %p258 = scmp.ne.s32.totalorder %s247, %s248
      %p259 = scmp.eq.s32.totalorder %s24, 0
      %p260 = por %p258, %p259
      %p261 = scmp.ne.s32.totalorder %s247, %s248
      %p262 = scmp.eq.s32.totalorder %s25, 1
      %p263 = por %p261, %p262
      %p265 = scmp.ne.s32.totalorder %s248, %s264
      %p266 = scmp.eq.s32.totalorder %s25, 0
      %p267 = por %p265, %p266
      %p268 = scmp.le.s32.totalorder 1, %s19
      %p269 = scmp.lt.s32.totalorder %s19, 3
      %p270 = pnand %p268, %p269
      %p271 = pneg %p270
      // Predicated region
      $region9: #{tpu_custom_call.1} parent=5 // pred_check
        _
      $region10: #{tpu_custom_call.1} parent=5 // pred_check_branch
        %273 = sbr.rel (%p270) target = $region12
      $region11: #{tpu_custom_call.1} parent=5 // pred_region
        %s274 = ssub.s32 %s19, 1
        // Predicated region
        $region13: #{tpu_custom_call.1} parent=11 // pred_check
          %p275 = pneg %p66
        $region14: #{tpu_custom_call.1} parent=11 // pred_check_branch
          %277 = sbr.rel (%p275) target = $region16
        $region15: #{tpu_custom_call.1} parent=11 // pred_region
          _
        $region16: #{tpu_custom_call.1} parent=11 // pred_fallthru
          _
        // Predicated region
        $region17: #{tpu_custom_call.1} parent=11 // pred_check
          %p278 = pneg %p87
        $region18: #{tpu_custom_call.1} parent=11 // pred_check_branch
          %280 = sbr.rel (%p278) target = $region20
        $region19: #{tpu_custom_call.1} parent=11 // pred_region
          _
        $region20: #{tpu_custom_call.1} parent=11 // pred_fallthru
          _
        // Predicated region
        $region21: #{tpu_custom_call.1} parent=11 // pred_check
          %p281 = pneg %p108
        $region22: #{tpu_custom_call.1} parent=11 // pred_check_branch
          %283 = sbr.rel (%p281) target = $region24
        $region23: #{tpu_custom_call.1} parent=11 // pred_region
          _
        $region24: #{tpu_custom_call.1} parent=11 // pred_fallthru
          _
        // Predicated region
        $region25: #{tpu_custom_call.1} parent=11 // pred_check
          %p284 = pneg %p129
        $region26: #{tpu_custom_call.1} parent=11 // pred_check_branch
          %286 = sbr.rel (%p284) target = $region28
        $region27: #{tpu_custom_call.1} parent=11 // pred_region
          _
        $region28: #{tpu_custom_call.1} parent=11 // pred_fallthru
          _
        // Predicated region
        $region29: #{tpu_custom_call.1} parent=11 // pred_check
          %p287 = pneg %p150
        $region30: #{tpu_custom_call.1} parent=11 // pred_check_branch
          %289 = sbr.rel (%p287) target = $region32
        $region31: #{tpu_custom_call.1} parent=11 // pred_region
          _
        $region32: #{tpu_custom_call.1} parent=11 // pred_fallthru
          _
        // Predicated region
        $region33: #{tpu_custom_call.1} parent=11 // pred_check
          %p290 = pneg %p171
        $region34: #{tpu_custom_call.1} parent=11 // pred_check_branch
          %292 = sbr.rel (%p290) target = $region36
        $region35: #{tpu_custom_call.1} parent=11 // pred_region
          _
        $region36: #{tpu_custom_call.1} parent=11 // pred_fallthru
          _
        // Predicated region
        $region37: #{tpu_custom_call.1} parent=11 // pred_check
          %p293 = pneg %p192
        $region38: #{tpu_custom_call.1} parent=11 // pred_check_branch
          %295 = sbr.rel (%p293) target = $region40
        $region39: #{tpu_custom_call.1} parent=11 // pred_region
          _
        $region40: #{tpu_custom_call.1} parent=11 // pred_fallthru
          _
        // Predicated region
        $region41: #{tpu_custom_call.1} parent=11 // pred_check
          %p296 = pneg %p213
        $region42: #{tpu_custom_call.1} parent=11 // pred_check_branch
          %298 = sbr.rel (%p296) target = $region44
        $region43: #{tpu_custom_call.1} parent=11 // pred_region
          _
        $region44: #{tpu_custom_call.1} parent=11 // pred_fallthru
          _
        // Predicated region
        $region45: #{tpu_custom_call.1} parent=11 // pred_check
          %p299 = pneg %p234
        $region46: #{tpu_custom_call.1} parent=11 // pred_check_branch
          %301 = sbr.rel (%p299) target = $region48
        $region47: #{tpu_custom_call.1} parent=11 // pred_region
          _
        $region48: #{tpu_custom_call.1} parent=11 // pred_fallthru
          _
      $region12: #{tpu_custom_call.1} parent=5 // pred_fallthru
        _
      %p302 = scmp.lt.s32.totalorder %s19, 2
      // Predicated region
      $region49: #{tpu_custom_call.1} parent=5 // pred_check
        %p303 = pneg %p302
      $region50: #{tpu_custom_call.1} parent=5 // pred_check_branch
        %305 = sbr.rel (%p303) target = $region52
      $region51: #{tpu_custom_call.1} parent=5 // pred_region
        // Predicated region
        $region53: #{tpu_custom_call.1} parent=51 // pred_check
          %p306 = pneg %p39
        $region54: #{tpu_custom_call.1} parent=51 // pred_check_branch
          %308 = sbr.rel (%p306) target = $region56
        $region55: #{tpu_custom_call.1} parent=51 // pred_region
          %p309 = scmp.lt.s32.totalorder %s19, 1
          %s310 = scalar_select %p309, %s19, 1
          %s311 = smul.addr %s310, 2
          %s312 = smul.addr %s311, 4
          %s313 = scalar_lea.vmem %s0, %s312
        $region56: #{tpu_custom_call.1} parent=51 // pred_fallthru
          _
      $region52: #{tpu_custom_call.1} parent=5 // pred_fallthru
        _
      %p314 = scmp.le.s32.totalorder 1, %s19
      %p315 = scmp.lt.s32.totalorder %s19, 3
      %p316 = pnand %p314, %p315
      %p317 = pneg %p316
      // Predicated region
      $region57: #{tpu_custom_call.1} parent=5 // pred_check
        _
      $region58: #{tpu_custom_call.1} parent=5 // pred_check_branch
        %319 = sbr.rel (%p316) target = $region60
      $region59: #{tpu_custom_call.1} parent=5 // pred_region
        %s320 = ssub.s32 %s19, 1
        %p321 = scmp.lt.s32.totalorder %s24, 1
        %s322 = scalar_select %p321, %s24, 1
        %s323 = smul.addr %s322, 2
        %s324 = smul.addr %s323, 4
        %s325 = scalar_lea.vmem %s0, %s324
        %p326 = pneg %p45
        %p327 = pneg %p42
        %p328 = pneg %p66
        %p329 = pneg %p63
        %p330 = pneg %p87
        %p331 = pneg %p84
        %p332 = pneg %p108
        %p333 = pneg %p105
        %p334 = pneg %p129
        %p335 = pneg %p126
        %p336 = pneg %p150
        %p337 = pneg %p147
        %p338 = pneg %p171
        %p339 = pneg %p168
        %p340 = pneg %p192
        %p341 = pneg %p189
        %p342 = pneg %p213
        %p343 = pneg %p210
        %p344 = pneg %p234
        %p345 = pneg %p231
        %p346 = pneg %p260
        %p347 = pneg %p257
        %s348 = sand.u32 %s247, 1
        %s349 = scalar_lea.sflag [#allocation3], %s348
        %s350 = sand.u32 %s247, 1
        %s351 = smul.addr %s350, 8
        %s352 = scalar_lea.vmem [#allocation2], %s351
        %p353 = scmp.lt.s32.totalorder %s24, 1
        %s354 = scalar_select %p353, %s24, 1
        %s355 = smul.addr %s354, 2
        %s356 = smul.addr %s355, 4
        %s357 = scalar_lea.vmem %s0, %s356
        %v359 = vld [vmem:[%s357] sm:$0xff]
        %v360 = vld [vmem:[%s1] sm:$0xf]
        %v361 = vld [vmem:[%s1 + $0x4] sm:$0xf]
        %v362 = vld [vmem:[%s1 + $0x8] sm:$0xf]
        %v363 = vld [vmem:[%s1 + $0xc] sm:$0xf]
        %v364 = vld [vmem:[%s1 + $0x10] sm:$0xf]
        %v365 = vld [vmem:[%s1 + $0x14] sm:$0xf]
        %v366 = vld [vmem:[%s1 + $0x18] sm:$0xf]
        %v367 = vld [vmem:[%s1 + $0x1c] sm:$0xf]
        %v368 = vld [vmem:[%s1 + $0x20] sm:$0xf]
        %v369 = vld [vmem:[%s1 + $0x24] sm:$0xf]
        %v370 = vld [vmem:[%s1 + $0x28] sm:$0xf]
        %v371 = vld [vmem:[%s1 + $0x2c] sm:$0xf]
        %v372 = vld [vmem:[%s1 + $0x30] sm:$0xf]
        %v373 = vld [vmem:[%s1 + $0x34] sm:$0xf]
        %v374 = vld [vmem:[%s1 + $0x38] sm:$0xf]
        %v375 = vld [vmem:[%s1 + $0x3c] sm:$0xf]
        %v376 = vld [vmem:[%s1 + $0x40] sm:$0xf]
        %v377 = vld [vmem:[%s1 + $0x44] sm:$0xf]
        %v378 = vld [vmem:[%s1 + $0x48] sm:$0xf]
        %v379 = vld [vmem:[%s1 + $0x4c] sm:$0xf]
        %v380 = vld [vmem:[%s1 + $0x50] sm:$0xf]
        %v381 = vld [vmem:[%s1 + $0x54] sm:$0xf]
        %v382 = vld [vmem:[%s1 + $0x58] sm:$0xf]
        %v383 = vld [vmem:[%s1 + $0x5c] sm:$0xf]
        %v384 = vld [vmem:[%s1 + $0x60] sm:$0xf]
        %v385 = vld [vmem:[%s1 + $0x64] sm:$0xf]
        %v386 = vld [vmem:[%s1 + $0x68] sm:$0xf]
        %v387 = vld [vmem:[%s1 + $0x6c] sm:$0xf]
        %v388 = vld [vmem:[%s1 + $0x70] sm:$0xf]
        %v389 = vld [vmem:[%s1 + $0x74] sm:$0xf]
        %v390 = vld [vmem:[%s1 + $0x78] sm:$0xf]
        %v391 = vld [vmem:[%s1 + $0x7c] sm:$0xf]
        %v393 = vcombine.high %v359, %v359
        %v427 = vunpack.c.l.b16 %v360
        %v428 = vunpack.c.l.b16 %v361
        %v429 = vunpack.c.l.b16 %v362
        %v430 = vunpack.c.l.b16 %v363
        %v431 = vunpack.c.l.b16 %v364
        %v432 = vunpack.c.l.b16 %v365
        %v433 = vunpack.c.l.b16 %v366
        %v434 = vunpack.c.l.b16 %v367
        %v435 = vunpack.c.l.b16 %v368
        %v436 = vunpack.c.l.b16 %v369
        %v437 = vunpack.c.l.b16 %v370
        %v438 = vunpack.c.l.b16 %v371
        %v439 = vunpack.c.l.b16 %v372
        %v440 = vunpack.c.l.b16 %v373
        %v441 = vunpack.c.l.b16 %v374
        %v442 = vunpack.c.l.b16 %v375
        %v443 = vunpack.c.l.b16 %v376
        %v444 = vunpack.c.l.b16 %v377
        %v445 = vunpack.c.l.b16 %v378
        %v446 = vunpack.c.l.b16 %v379
        %v447 = vunpack.c.l.b16 %v380
        %v448 = vunpack.c.l.b16 %v381
        %v449 = vunpack.c.l.b16 %v382
        %v450 = vunpack.c.l.b16 %v383
        %v451 = vunpack.c.l.b16 %v384
        %v452 = vunpack.c.l.b16 %v385
        %v453 = vunpack.c.l.b16 %v386
        %v454 = vunpack.c.l.b16 %v387
        %v455 = vunpack.c.l.b16 %v388
        %v456 = vunpack.c.l.b16 %v389
        %v457 = vunpack.c.l.b16 %v390
        %v458 = vunpack.c.l.b16 %v391
        %v459 = vpack.c.b16 %v428, %v427
        %v460 = vpack.c.b16 %v430, %v429
        %v461 = vpack.c.b16 %v432, %v431
        %v462 = vpack.c.b16 %v434, %v433
        %v463 = vpack.c.b16 %v436, %v435
        %v464 = vpack.c.b16 %v438, %v437
        %v465 = vpack.c.b16 %v440, %v439
        %v466 = vpack.c.b16 %v442, %v441
        %v467 = vpack.c.b16 %v444, %v443
        %v468 = vpack.c.b16 %v446, %v445
        %v469 = vpack.c.b16 %v448, %v447
        %v470 = vpack.c.b16 %v450, %v449
        %v471 = vpack.c.b16 %v452, %v451
        %v472 = vpack.c.b16 %v454, %v453
        %v473 = vpack.c.b16 %v456, %v455
        %v474 = vpack.c.b16 %v458, %v457
        %491 = vmatprep.subr.bf16.mxu0 0
        %492 = vmatpush1.bf16.msra.mxu0 %v459
        %493 = vmatprep.subr.bf16.mxu0 0
        %494 = vmatpush1.bf16.msra.mxu0 %v460
        %495 = vmatprep.subr.bf16.mxu0 0
        %496 = vmatpush1.bf16.msra.mxu0 %v461
        %497 = vmatprep.subr.bf16.mxu0 0
        %498 = vmatpush1.bf16.msra.mxu0 %v462
        %499 = vmatprep.subr.bf16.mxu0 0
        %500 = vmatpush1.bf16.msra.mxu0 %v463
        %501 = vmatprep.subr.bf16.mxu0 0
        %502 = vmatpush1.bf16.msra.mxu0 %v464
        %503 = vmatprep.subr.bf16.mxu0 0
        %504 = vmatpush1.bf16.msra.mxu0 %v465
        %505 = vmatprep.subr.bf16.mxu0 0
        %506 = vmatpush1.bf16.msra.mxu0 %v466
        %507 = vmatprep.subr.bf16.mxu0 0
        %508 = vmatpush1.bf16.msra.mxu0 %v467
        %509 = vmatprep.subr.bf16.mxu0 0
        %510 = vmatpush1.bf16.msra.mxu0 %v468
        %511 = vmatprep.subr.bf16.mxu0 0
        %512 = vmatpush1.bf16.msra.mxu0 %v469
        %513 = vmatprep.subr.bf16.mxu0 0
        %514 = vmatpush1.bf16.msra.mxu0 %v470
        %515 = vmatprep.subr.bf16.mxu0 0
        %516 = vmatpush1.bf16.msra.mxu0 %v471
        %517 = vmatprep.subr.bf16.mxu0 0
        %518 = vmatpush1.bf16.msra.mxu0 %v472
        %519 = vmatprep.subr.bf16.mxu0 0
        %520 = vmatpush1.bf16.msra.mxu0 %v473
        %521 = vmatprep.subr.bf16.mxu0 0
        %522 = vmatpush1.bf16.msra.mxu0 %v474
        %523 = vmatprep.mubr.f32.mxu0 %v393
        %524 = vmatmul.mubr.f32.gmra.mrb[0].mxu0 %v359
        %v525 = vpop.f32.mrb[0].mxu0
        %v526 = vadd.f32 0.0, %v525
        %v527 = vpop.f32.mrb[0].mxu0
        %528 = vdwg.mxu0
        %v529 = vld [vmem:[%s4] sm:$0xff]
        %v530 = vld [vmem:[%s5] sm:$0xff]
        %532 = vset.pattern.permute.xlu0 0
        %533 = vperm.xlu0 %532, %v530
        %v534 = vpop.permute.xlu0 %533
        %vm536 = vcmask 31744
        %v538 = vsel %vm536, %v529, 0
        %vm540 = vcmask 1043456
        %v542 = vsel %vm540, %v526, 0
        %544 = vmatprep.subr.mxu0 0.0
        %545 = vmatpush1.msra.mxu0 %v542
        %546 = vmatprep.subr.mxu0 0.0
        %547 = vmatpush1.msra.mxu0 0.0
        %548 = vmatprep.subr.mxu0 0.0
        %549 = vmatpush1.msra.mxu0 0.0
        %550 = vmatprep.subr.mxu0 0.0
        %551 = vmatpush1.msra.mxu0 0.0
        %552 = vmatprep.subr.mxu0 0.0
        %553 = vmatpush1.msra.mxu0 0.0
        %554 = vmatprep.subr.mxu0 0.0
        %555 = vmatpush1.msra.mxu0 0.0
        %556 = vmatprep.subr.mxu0 0.0
        %557 = vmatpush1.msra.mxu0 0.0
        %558 = vmatprep.subr.mxu0 0.0
        %559 = vmatpush1.msra.mxu0 0.0
        %560 = vmatprep.subr.mxu0 0.0
        %561 = vmatpush1.msra.mxu0 0.0
        %562 = vmatprep.subr.mxu0 0.0
        %563 = vmatpush1.msra.mxu0 0.0
        %564 = vmatprep.subr.mxu0 0.0
        %565 = vmatpush1.msra.mxu0 0.0
        %566 = vmatprep.subr.mxu0 0.0
        %567 = vmatpush1.msra.mxu0 0.0
        %568 = vmatprep.subr.mxu0 0.0
        %569 = vmatpush1.msra.mxu0 0.0
        %570 = vmatprep.subr.mxu0 0.0
        %571 = vmatpush1.msra.mxu0 0.0
        %572 = vmatprep.subr.mxu0 0.0
        %573 = vmatpush1.msra.mxu0 0.0
        %574 = vmatprep.subr.mxu0 0.0
        %575 = vmatpush1.msra.mxu0 0.0
        %576 = vmatprep.subr.mxu0 0.0
        %577 = vmatpush1.msra.mxu0 0.0
        %578 = vmatprep.subr.mxu0 0.0
        %579 = vmatpush1.msra.mxu0 0.0
        %580 = vmatprep.subr.mxu0 0.0
        %581 = vmatpush1.msra.mxu0 0.0
        %582 = vmatprep.subr.mxu0 0.0
        %583 = vmatpush1.msra.mxu0 0.0
        %584 = vmatprep.subr.mxu0 0.0
        %585 = vmatpush1.msra.mxu0 0.0
        %586 = vmatprep.subr.mxu0 0.0
        %587 = vmatpush1.msra.mxu0 0.0
        %588 = vmatprep.subr.mxu0 0.0
        %589 = vmatpush1.msra.mxu0 0.0
        %590 = vmatprep.subr.mxu0 0.0
        %591 = vmatpush1.msra.mxu0 0.0
        %592 = vmatprep.subr.mxu0 0.0
        %593 = vmatpush1.msra.mxu0 0.0
        %594 = vmatprep.subr.mxu0 0.0
        %595 = vmatpush1.msra.mxu0 0.0
        %596 = vmatprep.subr.mxu0 0.0
        %597 = vmatpush1.msra.mxu0 0.0
        %598 = vmatprep.subr.mxu0 0.0
        %599 = vmatpush1.msra.mxu0 0.0
        %600 = vmatprep.subr.mxu0 0.0
        %601 = vmatpush1.msra.mxu0 0.0
        %602 = vmatprep.subr.mxu0 0.0
        %603 = vmatpush1.msra.mxu0 0.0
        %604 = vmatprep.subr.mxu0 0.0
        %605 = vmatpush1.msra.mxu0 0.0
        %606 = vmatprep.subr.mxu0 0.0
        %607 = vmatpush1.msra.mxu0 0.0
        %608 = vmatprep.mubr.f32.mxu0 0.0
        %609 = vmatmul.mubr.f32.gmra.mrb[0].mxu0 %v538
        %v610 = vpop.f32.mrb[0].mxu0
        %v611 = vadd.f32 %v534, %v610
        %v612 = vpop.f32.mrb[0].mxu0
        %613 = vdwg.mxu0
        %v614 = vadd.f32 %v611, 3.0
        %v615 = vmax.f32 %v614, 0.0
        %v616 = vmin.f32 %v615, 6.0
        %v617 = vmul.f32 %v611, %v616
        %v618 = vmul.f32 %v617, 0.16666667
        %v619 = vld [vmem:[%s6] sm:$0xf]
        %v620 = vld [vmem:[%s7] sm:$0xf]
        %622 = vset.pattern.permute.xlu0 0
        %623 = vperm.xlu0 %622, %v620
        %v624 = vpop.permute.xlu0 %623
        %vm626 = vcmask 64512
        %v628 = vsel %vm626, %v619, 0
        %630 = vmatprep.subr.mxu0 0.0
        %631 = vmatpush1.msra.mxu0 %v618
        %632 = vmatprep.subr.mxu0 0.0
        %633 = vmatpush1.msra.mxu0 0.0
        %634 = vmatprep.subr.mxu0 0.0
        %635 = vmatpush1.msra.mxu0 0.0
        %636 = vmatprep.subr.mxu0 0.0
        %637 = vmatpush1.msra.mxu0 0.0
        %638 = vmatprep.subr.mxu0 0.0
        %639 = vmatpush1.msra.mxu0 0.0
        %640 = vmatprep.subr.mxu0 0.0
        %641 = vmatpush1.msra.mxu0 0.0
        %642 = vmatprep.subr.mxu0 0.0
        %643 = vmatpush1.msra.mxu0 0.0
        %644 = vmatprep.subr.mxu0 0.0
        %645 = vmatpush1.msra.mxu0 0.0
        %646 = vmatprep.subr.mxu0 0.0
        %647 = vmatpush1.msra.mxu0 0.0
        %648 = vmatprep.subr.mxu0 0.0
        %649 = vmatpush1.msra.mxu0 0.0
        %650 = vmatprep.subr.mxu0 0.0
        %651 = vmatpush1.msra.mxu0 0.0
        %652 = vmatprep.subr.mxu0 0.0
        %653 = vmatpush1.msra.mxu0 0.0
        %654 = vmatprep.subr.mxu0 0.0
        %655 = vmatpush1.msra.mxu0 0.0
        %656 = vmatprep.subr.mxu0 0.0
        %657 = vmatpush1.msra.mxu0 0.0
        %658 = vmatprep.subr.mxu0 0.0
        %659 = vmatpush1.msra.mxu0 0.0
        %660 = vmatprep.subr.mxu0 0.0
        %661 = vmatpush1.msra.mxu0 0.0
        %662 = vmatprep.subr.mxu0 0.0
        %663 = vmatpush1.msra.mxu0 0.0
        %664 = vmatprep.subr.mxu0 0.0
        %665 = vmatpush1.msra.mxu0 0.0
        %666 = vmatprep.subr.mxu0 0.0
        %667 = vmatpush1.msra.mxu0 0.0
        %668 = vmatprep.subr.mxu0 0.0
        %669 = vmatpush1.msra.mxu0 0.0
        %670 = vmatprep.subr.mxu0 0.0
        %671 = vmatpush1.msra.mxu0 0.0
        %672 = vmatprep.subr.mxu0 0.0
        %673 = vmatpush1.msra.mxu0 0.0
        %674 = vmatprep.subr.mxu0 0.0
        %675 = vmatpush1.msra.mxu0 0.0
        %676 = vmatprep.subr.mxu0 0.0
        %677 = vmatpush1.msra.mxu0 0.0
        %678 = vmatprep.subr.mxu0 0.0
        %679 = vmatpush1.msra.mxu0 0.0
        %680 = vmatprep.subr.mxu0 0.0
        %681 = vmatpush1.msra.mxu0 0.0
        %682 = vmatprep.subr.mxu0 0.0
        %683 = vmatpush1.msra.mxu0 0.0
        %684 = vmatprep.subr.mxu0 0.0
        %685 = vmatpush1.msra.mxu0 0.0
        %686 = vmatprep.subr.mxu0 0.0
        %687 = vmatpush1.msra.mxu0 0.0
        %688 = vmatprep.subr.mxu0 0.0
        %689 = vmatpush1.msra.mxu0 0.0
        %690 = vmatprep.subr.mxu0 0.0
        %691 = vmatpush1.msra.mxu0 0.0
        %692 = vmatprep.subr.mxu0 0.0
        %693 = vmatpush1.msra.mxu0 0.0
        %694 = vmatprep.mubr.f32.mxu0 0.0
        %695 = vmatmul.mubr.f32.gmra.mrb[0].mxu0 %v628
        %v696 = vpop.f32.mrb[0].mxu0
        %v697 = vadd.f32 %v624, %v696
        %v698 = vpop.f32.mrb[0].mxu0
        %699 = vdwg.mxu0
        %v700 = vxor.u32 %v697, 2147483648
        %v701 = vmul.f32 %v700, 1.442695
        %v702 = vpow.pop %v701
        %v703 = vadd.f32 %v702, 1.0
        %v704 = vrcp.pop %v703
        %v705 = vmul.f32 1.0, %v704
        %v706 = vld [vmem:[%s8] sm:$0xf]
        %v707 = vld [vmem:[%s9] sm:$0xf]
        %709 = vset.pattern.permute.xlu0 0
        %710 = vperm.xlu0 %709, %v707
        %v711 = vpop.permute.xlu0 %710
        %714 = vrot.lane.b32.xlu0 %v618, 112
        %v715 = vpop.permute.xlu0 %714
        %v718 = vsel %vm626, %v706, 0
        %720 = vmatprep.subr.mxu0 0.0
        %721 = vmatpush1.msra.mxu0 %v715
        %722 = vmatprep.subr.mxu0 0.0
        %723 = vmatpush1.msra.mxu0 0.0
        %724 = vmatprep.subr.mxu0 0.0
        %725 = vmatpush1.msra.mxu0 0.0
        %726 = vmatprep.subr.mxu0 0.0
        %727 = vmatpush1.msra.mxu0 0.0
        %728 = vmatprep.subr.mxu0 0.0
        %729 = vmatpush1.msra.mxu0 0.0
        %730 = vmatprep.subr.mxu0 0.0
        %731 = vmatpush1.msra.mxu0 0.0
        %732 = vmatprep.subr.mxu0 0.0
        %733 = vmatpush1.msra.mxu0 0.0
        %734 = vmatprep.subr.mxu0 0.0
        %735 = vmatpush1.msra.mxu0 0.0
        %736 = vmatprep.subr.mxu0 0.0
        %737 = vmatpush1.msra.mxu0 0.0
        %738 = vmatprep.subr.mxu0 0.0
        %739 = vmatpush1.msra.mxu0 0.0
        %740 = vmatprep.subr.mxu0 0.0
        %741 = vmatpush1.msra.mxu0 0.0
        %742 = vmatprep.subr.mxu0 0.0
        %743 = vmatpush1.msra.mxu0 0.0
        %744 = vmatprep.subr.mxu0 0.0
        %745 = vmatpush1.msra.mxu0 0.0
        %746 = vmatprep.subr.mxu0 0.0
        %747 = vmatpush1.msra.mxu0 0.0
        %748 = vmatprep.subr.mxu0 0.0
        %749 = vmatpush1.msra.mxu0 0.0
        %750 = vmatprep.subr.mxu0 0.0
        %751 = vmatpush1.msra.mxu0 0.0
        %752 = vmatprep.subr.mxu0 0.0
        %753 = vmatpush1.msra.mxu0 0.0
        %754 = vmatprep.subr.mxu0 0.0
        %755 = vmatpush1.msra.mxu0 0.0
        %756 = vmatprep.subr.mxu0 0.0
        %757 = vmatpush1.msra.mxu0 0.0
        %758 = vmatprep.subr.mxu0 0.0
        %759 = vmatpush1.msra.mxu0 0.0
        %760 = vmatprep.subr.mxu0 0.0
        %761 = vmatpush1.msra.mxu0 0.0
        %762 = vmatprep.subr.mxu0 0.0
        %763 = vmatpush1.msra.mxu0 0.0
        %764 = vmatprep.subr.mxu0 0.0
        %765 = vmatpush1.msra.mxu0 0.0
        %766 = vmatprep.subr.mxu0 0.0
        %767 = vmatpush1.msra.mxu0 0.0
        %768 = vmatprep.subr.mxu0 0.0
        %769 = vmatpush1.msra.mxu0 0.0
        %770 = vmatprep.subr.mxu0 0.0
        %771 = vmatpush1.msra.mxu0 0.0
        %772 = vmatprep.subr.mxu0 0.0
        %773 = vmatpush1.msra.mxu0 0.0
        %774 = vmatprep.subr.mxu0 0.0
        %775 = vmatpush1.msra.mxu0 0.0
        %776 = vmatprep.subr.mxu0 0.0
        %777 = vmatpush1.msra.mxu0 0.0
        %778 = vmatprep.subr.mxu0 0.0
        %779 = vmatpush1.msra.mxu0 0.0
        %780 = vmatprep.subr.mxu0 0.0
        %781 = vmatpush1.msra.mxu0 0.0
        %782 = vmatprep.subr.mxu0 0.0
        %783 = vmatpush1.msra.mxu0 0.0
        %784 = vmatprep.mubr.f32.mxu0 0.0
        %785 = vmatmul.mubr.f32.gmra.mrb[0].mxu0 %v718
        %v786 = vpop.f32.mrb[0].mxu0
        %v787 = vadd.f32 %v711, %v786
        %v788 = vpop.f32.mrb[0].mxu0
        %789 = vdwg.mxu0
        %v790 = vxor.u32 %v787, 2147483648
        %v791 = vmul.f32 %v790, 1.442695
        %v792 = vpow.pop %v791
        %v793 = vadd.f32 %v792, 1.0
        %v794 = vrcp.pop %v793
        %v795 = vmul.f32 1.0, %v794
        %v796 = vpack.c.bf16 %v705, %v705
        %v797 = vpack.c.bf16 %v795, %v795
        %v798 = vld [vmem:[%s2] sm:$0xff]
        %v799 = vld [vmem:[%s2 + $0x8] sm:$0xff]
        %v802 = vunpack.c.l.b16 %v798
        %v803 = vunpack.c.h.b16 %v798
        %v804 = vunpack.c.l.b16 %v799
        %v805 = vunpack.c.h.b16 %v799
        %v806 = vpack.c.b16 %v804, %v802
        %v807 = vpack.c.b16 %v805, %v803
        %vm810 = vcmask 130048
        %v812 = vsel %vm810, %v796, 0
        %814 = vmatprep.subr.bf16.mxu0 %v807
        %815 = vmatpush1.bf16.msra.mxu0 %v806
        %816 = vmatprep.subr.bf16.mxu0 0
        %817 = vmatpush1.bf16.msra.mxu0 0
        %818 = vmatprep.subr.bf16.mxu0 0
        %819 = vmatpush1.bf16.msra.mxu0 0
        %820 = vmatprep.subr.bf16.mxu0 0
        %821 = vmatpush1.bf16.msra.mxu0 0
        %822 = vmatprep.subr.bf16.mxu0 0
        %823 = vmatpush1.bf16.msra.mxu0 0
        %824 = vmatprep.subr.bf16.mxu0 0
        %825 = vmatpush1.bf16.msra.mxu0 0
        %826 = vmatprep.subr.bf16.mxu0 0
        %827 = vmatpush1.bf16.msra.mxu0 0
        %828 = vmatprep.subr.bf16.mxu0 0
        %829 = vmatpush1.bf16.msra.mxu0 0
        %830 = vmatprep.subr.bf16.mxu0 0
        %831 = vmatpush1.bf16.msra.mxu0 0
        %832 = vmatprep.subr.bf16.mxu0 0
        %833 = vmatpush1.bf16.msra.mxu0 0
        %834 = vmatprep.subr.bf16.mxu0 0
        %835 = vmatpush1.bf16.msra.mxu0 0
        %836 = vmatprep.subr.bf16.mxu0 0
        %837 = vmatpush1.bf16.msra.mxu0 0
        %838 = vmatprep.subr.bf16.mxu0 0
        %839 = vmatpush1.bf16.msra.mxu0 0
        %840 = vmatprep.subr.bf16.mxu0 0
        %841 = vmatpush1.bf16.msra.mxu0 0
        %842 = vmatprep.subr.bf16.mxu0 0
        %843 = vmatpush1.bf16.msra.mxu0 0
        %844 = vmatprep.subr.bf16.mxu0 0
        %845 = vmatpush1.bf16.msra.mxu0 0
        %846 = vmatprep.mubr.bf16.mxu0 0
        %847 = vmatmul.mubr.bf16.gmra.mrb[0].mxu0 %v812
        %v848 = vpop.f32.mrb[0].mxu0
        %v849 = vadd.f32 0.0, %v848
        %v850 = vpop.f32.mrb[0].mxu0
        %v851 = vadd.f32 0.0, %v850
        %v852 = vpop.f32.mrb[0].mxu0
        %v853 = vpop.f32.mrb[0].mxu0
        %854 = vdwg.mxu0
        %v855 = vld [vmem:[%s3] sm:$0xff]
        %v856 = vld [vmem:[%s3 + $0x8] sm:$0xff]
        %v859 = vunpack.c.l.b16 %v855
        %v860 = vunpack.c.h.b16 %v855
        %v861 = vunpack.c.l.b16 %v856
        %v862 = vunpack.c.h.b16 %v856
        %v863 = vpack.c.b16 %v861, %v859
        %v864 = vpack.c.b16 %v862, %v860
        %v868 = vsel %vm810, %v797, 0
        %870 = vmatprep.subr.bf16.mxu0 %v864
        %871 = vmatpush1.bf16.msra.mxu0 %v863
        %872 = vmatprep.subr.bf16.mxu0 0
        %873 = vmatpush1.bf16.msra.mxu0 0
        %874 = vmatprep.subr.bf16.mxu0 0
        %875 = vmatpush1.bf16.msra.mxu0 0
        %876 = vmatprep.subr.bf16.mxu0 0
        %877 = vmatpush1.bf16.msra.mxu0 0
        %878 = vmatprep.subr.bf16.mxu0 0
        %879 = vmatpush1.bf16.msra.mxu0 0
        %880 = vmatprep.subr.bf16.mxu0 0
        %881 = vmatpush1.bf16.msra.mxu0 0
        %882 = vmatprep.subr.bf16.mxu0 0
        %883 = vmatpush1.bf16.msra.mxu0 0
        %884 = vmatprep.subr.bf16.mxu0 0
        %885 = vmatpush1.bf16.msra.mxu0 0
        %886 = vmatprep.subr.bf16.mxu0 0
        %887 = vmatpush1.bf16.msra.mxu0 0
        %888 = vmatprep.subr.bf16.mxu0 0
        %889 = vmatpush1.bf16.msra.mxu0 0
        %890 = vmatprep.subr.bf16.mxu0 0
        %891 = vmatpush1.bf16.msra.mxu0 0
        %892 = vmatprep.subr.bf16.mxu0 0
        %893 = vmatpush1.bf16.msra.mxu0 0
        %894 = vmatprep.subr.bf16.mxu0 0
        %895 = vmatpush1.bf16.msra.mxu0 0
        %896 = vmatprep.subr.bf16.mxu0 0
        %897 = vmatpush1.bf16.msra.mxu0 0
        %898 = vmatprep.subr.bf16.mxu0 0
        %899 = vmatpush1.bf16.msra.mxu0 0
        %900 = vmatprep.subr.bf16.mxu0 0
        %901 = vmatpush1.bf16.msra.mxu0 0
        %902 = vmatprep.mubr.bf16.mxu0 0
        %903 = vmatmul.mubr.bf16.gmra.mrb[0].mxu0 %v868
        %v904 = vpop.f32.mrb[0].mxu0
        %v905 = vadd.f32 0.0, %v904
        %v906 = vpop.f32.mrb[0].mxu0
        %v907 = vadd.f32 0.0, %v906
        %v908 = vpop.f32.mrb[0].mxu0
        %v909 = vpop.f32.mrb[0].mxu0
        %910 = vdwg.mxu0
        %v913 = vcombine.low %v905, %v907
        %v915 = vmul.f32 %v359, %v913
        %v918 = vcombine.low %v849, %v851
        %v920 = vmul.f32 %v915, %v918
        %921 = vst [vmem:[%s352] sm:$0xff] %v920
        %s922 = sand.u32 %s247, 1
        %s923 = scalar_lea.sflag [#allocation3], %s922
        %s924 = sand.u32 %s247, 1
        %s925 = smul.addr %s924, 8
        %s926 = scalar_lea.vmem [#allocation2], %s925
        // Predicated region
        $region61: #{tpu_custom_call.1} parent=59 // pred_check
          %p927 = pneg %p257
        $region62: #{tpu_custom_call.1} parent=59 // pred_check_branch
          %929 = sbr.rel (%p927) target = $region64
        $region63: #{tpu_custom_call.1} parent=59 // pred_region
          %s931 = ssub.s32 128, 128
          %932 = vsyncadd %s923, %s931
          %s933 = smul.addr %s24, 2
          %s934 = smul.addr %s933, 64
          %s935 = scalar_lea.hbm %s10, %s934
          %s937 = sshll.u32 %s926, 4
          %s938 = int_to_ptr.vmem [resolvable:$true] %s937
          %940 = dma.vmem_to_hbm [thread:$0]  %s938, 128, %s935, %s923
        $region64: #{tpu_custom_call.1} parent=59 // pred_fallthru
          _
      $region60: #{tpu_custom_call.1} parent=5 // pred_fallthru
        _
      %p941 = scmp.le.s32.totalorder 2, %s19
      // Predicated region
      $region65: #{tpu_custom_call.1} parent=5 // pred_check
        %p942 = pneg %p941
      $region66: #{tpu_custom_call.1} parent=5 // pred_check_branch
        %944 = sbr.rel (%p942) target = $region68
      $region67: #{tpu_custom_call.1} parent=5 // pred_region
        %s945 = ssub.s32 %s19, 2
        // Predicated region
        $region69: #{tpu_custom_call.1} parent=67 // pred_check
          %p946 = pneg %p263
        $region70: #{tpu_custom_call.1} parent=67 // pred_check_branch
          %948 = sbr.rel (%p946) target = $region72
        $region71: #{tpu_custom_call.1} parent=67 // pred_region
          %s949 = sand.u32 %s248, 1
          %s950 = scalar_lea.sflag [#allocation3], %s949
          %s951 = sand.u32 %s248, 1
          %s952 = smul.addr %s951, 8
          %s953 = scalar_lea.vmem [#allocation2], %s952
          %954 = dma.done %s950, 128
        $region72: #{tpu_custom_call.1} parent=67 // pred_fallthru
          _
      $region68: #{tpu_custom_call.1} parent=5 // pred_fallthru
        _
    $region6: #{tpu_custom_call.1} parent=1 // loop_footer
      %s23 = sadd.s32 1, %s19
    $region7: #{tpu_custom_call.1} parent=1 // loop_footer_branch
      %18 = sbr.rel target = $region3
    $region8: #{tpu_custom_call.1} parent=1 // loop_exit
      _
    %955 = vsyncpa [#allocation3], 1
    %s956 = scalar_lea.sflag [#allocation3], 1
    %957 = vsyncpa %s956, 1

// kernel: tpu_custom_call.1
$region0: #{tpu_custom_call.1}
  #allocation0 [shape = 'u32[]', space=smem, size = 0x4, offset = 0x4, fixed_abs, tag = 'smem constant byte address 0x4 - core index']
  #allocation1 [shape = 'u32[144,128]{1,0:T(1,128)}', space=vmem, size = 0x12000, scoped, tag = 'internal scratch']
  %s0 = inlined_call_operand.vmem [shape: f32[2,4,256], index: 0, kind: input, shape index: {}]
  %s1 = inlined_call_operand.vmem [shape: bf16[256,32], index: 1, kind: input, shape index: {}]
  %s2 = inlined_call_operand.vmem [shape: bf16[16,256], index: 2, kind: input, shape index: {}]
  %s3 = inlined_call_operand.vmem [shape: bf16[16,256], index: 3, kind: input, shape index: {}]
  %s4 = inlined_call_operand.vmem [shape: f32[8,4], index: 4, kind: input, shape index: {}]
  %s5 = inlined_call_operand.vmem [shape: f32[8,1], index: 5, kind: input, shape index: {}]
  %s6 = inlined_call_operand.vmem [shape: f32[4,8], index: 6, kind: input, shape index: {}]
  %s7 = inlined_call_operand.vmem [shape: f32[4,1], index: 7, kind: input, shape index: {}]
  %s8 = inlined_call_operand.vmem [shape: f32[4,8], index: 8, kind: input, shape index: {}]
  %s9 = inlined_call_operand.vmem [shape: f32[4,1], index: 9, kind: input, shape index: {}]
  %s10 = inlined_call_operand.hbm [shape: f32[2,4,256], index: 10, kind: output, shape index: {}]
  %s11 = sld [smem:[#allocation0]]
  $region73: #{tpu_custom_call.1} parent=0
    _
  %s13 = ssub.s32 1, %s11
  %s14 = scalar_select 0, %s13, %s11
  $region1: #{tpu_custom_call.1} parent=0
    #allocation2 [shape = 'u8[8192]{0}', space=vmem, size = 0x2000, scoped, tag = 'output window, operand 0']
    #allocation3 [shape = 's32[2]{0}', space=sflag, size = 0x8, scoped, tag = 'scoped memory for tpu_custom_call.1']
    %15 = vsyncpa [#allocation3], 0
    %s16 = scalar_lea.sflag [#allocation3], 1
    %17 = vsyncpa %s16, 0
    loop: start=0, step=1, limit=4
    $region2: #{tpu_custom_call.1} parent=1 // loop_pre_header
      _
    $region3: #{tpu_custom_call.1} parent=1 // loop_header
      %s19 = sphi 0, %s23
      %p20 = scmp.ge.s32.totalorder %s19, 4
      %s29 = sphi 0, %s31
      %s32 = sphi 0, %s29
      %s33 = sphi 0, %s32
      %s49 = sphi 0, %s33
      %s53 = sphi 0, %s53
      %s55 = sphi 0, %s53
      %s56 = sphi 0, %s55
      %s70 = sphi 0, %s56
      %s74 = sphi 0, %s74
      %s76 = sphi 0, %s74
      %s77 = sphi 0, %s76
      %s91 = sphi 0, %s77
      %s95 = sphi 0, %s95
      %s97 = sphi 0, %s95
      %s98 = sphi 0, %s97
      %s112 = sphi 0, %s98
      %s116 = sphi 0, %s116
      %s118 = sphi 0, %s116
      %s119 = sphi 0, %s118
      %s133 = sphi 0, %s119
      %s137 = sphi 0, %s137
      %s139 = sphi 0, %s137
      %s140 = sphi 0, %s139
      %s154 = sphi 0, %s140
      %s158 = sphi 0, %s158
      %s160 = sphi 0, %s158
      %s161 = sphi 0, %s160
      %s175 = sphi 0, %s161
      %s179 = sphi 0, %s179
      %s181 = sphi 0, %s179
      %s182 = sphi 0, %s181
      %s196 = sphi 0, %s182
      %s200 = sphi 0, %s200
      %s202 = sphi 0, %s200
      %s203 = sphi 0, %s202
      %s217 = sphi 0, %s203
      %s221 = sphi 0, %s221
      %s223 = sphi 0, %s221
      %s224 = sphi 0, %s223
      %s238 = sphi 0, %s224
      %s244 = sphi 0, %s246
      %s247 = sphi 0, %s244
      %s248 = sphi 0, %s247
      %s264 = sphi 0, %s248
    $region4: #{tpu_custom_call.1} parent=1 // loop_header_branch
      %22 = sbr.rel (%p20) target = $region8
    $region5: #{tpu_custom_call.1} parent=1 // loop_body
      %s24 = ssub.s32 %s19, 1
      %s25 = ssub.s32 %s19, 2
      %s26 = sadd.s32 %s19, 1
      %s27 = ssub.s32 %s19, %s26
      %p28 = scmp.eq.s32.totalorder %s27, 0
      %s30 = sadd.s32 %s29, 1
      %s31 = scalar_select %p28, %s29, %s30
      %p34 = pneg %p28
      %p35 = scmp.eq.s32.totalorder %s19, 1
      %p36 = por %p34, %p35
      %p37 = scmp.ne.s32.totalorder %s29, %s32
      %p38 = scmp.eq.s32.totalorder %s19, 0
      %p39 = por %p37, %p38
      %p40 = scmp.ne.s32.totalorder %s29, %s32
      %p41 = scmp.eq.s32.totalorder %s24, 1
      %p42 = por %p40, %p41
      %p43 = scmp.ne.s32.totalorder %s32, %s33
      %p44 = scmp.eq.s32.totalorder %s24, 0
      %p45 = por %p43, %p44
      %p46 = scmp.ne.s32.totalorder %s32, %s33
      %p47 = scmp.eq.s32.totalorder %s25, 1
      %p48 = por %p46, %p47
      %p50 = scmp.ne.s32.totalorder %s33, %s49
      %p51 = scmp.eq.s32.totalorder %s25, 0
      %p52 = por %p50, %p51
      %s54 = sadd.s32 %s53, 1
      %p57 = scmp.eq.s32.totalorder %s19, 1
      %p58 = scmp.ne.s32.totalorder %s53, %s55
      %p59 = scmp.eq.s32.totalorder %s19, 0
      %p60 = por %p58, %p59
      %p61 = scmp.ne.s32.totalorder %s53, %s55
      %p62 = scmp.eq.s32.totalorder %s24, 1
      %p63 = por %p61, %p62
      %p64 = scmp.ne.s32.totalorder %s55, %s56
      %p65 = scmp.eq.s32.totalorder %s24, 0
      %p66 = por %p64, %p65
      %p67 = scmp.ne.s32.totalorder %s55, %s56
      %p68 = scmp.eq.s32.totalorder %s25, 1
      %p69 = por %p67, %p68
      %p71 = scmp.ne.s32.totalorder %s56, %s70
      %p72 = scmp.eq.s32.totalorder %s25, 0
      %p73 = por %p71, %p72
      %s75 = sadd.s32 %s74, 1
      %p78 = scmp.eq.s32.totalorder %s19, 1
      %p79 = scmp.ne.s32.totalorder %s74, %s76
      %p80 = scmp.eq.s32.totalorder %s19, 0
      %p81 = por %p79, %p80
      %p82 = scmp.ne.s32.totalorder %s74, %s76
      %p83 = scmp.eq.s32.totalorder %s24, 1
      %p84 = por %p82, %p83
      %p85 = scmp.ne.s32.totalorder %s76, %s77
      %p86 = scmp.eq.s32.totalorder %s24, 0
      %p87 = por %p85, %p86
      %p88 = scmp.ne.s32.totalorder %s76, %s77
      %p89 = scmp.eq.s32.totalorder %s25, 1
      %p90 = por %p88, %p89
      %p92 = scmp.ne.s32.totalorder %s77, %s91
      %p93 = scmp.eq.s32.totalorder %s25, 0
      %p94 = por %p92, %p93
      %s96 = sadd.s32 %s95, 1
      %p99 = scmp.eq.s32.totalorder %s19, 1
      %p100 = scmp.ne.s32.totalorder %s95, %s97
      %p101 = scmp.eq.s32.totalorder %s19, 0
      %p102 = por %p100, %p101
      %p103 = scmp.ne.s32.totalorder %s95, %s97
      %p104 = scmp.eq.s32.totalorder %s24, 1
      %p105 = por %p103, %p104
      %p106 = scmp.ne.s32.totalorder %s97, %s98
      %p107 = scmp.eq.s32.totalorder %s24, 0
      %p108 = por %p106, %p107
      %p109 = scmp.ne.s32.totalorder %s97, %s98
      %p110 = scmp.eq.s32.totalorder %s25, 1
      %p111 = por %p109, %p110
      %p113 = scmp.ne.s32.totalorder %s98, %s112
      %p114 = scmp.eq.s32.totalorder %s25, 0
      %p115 = por %p113, %p114
      %s117 = sadd.s32 %s116, 1
      %p120 = scmp.eq.s32.totalorder %s19, 1
      %p121 = scmp.ne.s32.totalorder %s116, %s118
      %p122 = scmp.eq.s32.totalorder %s19, 0
      %p123 = por %p121, %p122
      %p124 = scmp.ne.s32.totalorder %s116, %s118
      %p125 = scmp.eq.s32.totalorder %s24, 1
      %p126 = por %p124, %p125
      %p127 = scmp.ne.s32.totalorder %s118, %s119
      %p128 = scmp.eq.s32.totalorder %s24, 0
      %p129 = por %p127, %p128
      %p130 = scmp.ne.s32.totalorder %s118, %s119
      %p131 = scmp.eq.s32.totalorder %s25, 1
      %p132 = por %p130, %p131
      %p134 = scmp.ne.s32.totalorder %s119, %s133
      %p135 = scmp.eq.s32.totalorder %s25, 0
      %p136 = por %p134, %p135
      %s138 = sadd.s32 %s137, 1
      %p141 = scmp.eq.s32.totalorder %s19, 1
      %p142 = scmp.ne.s32.totalorder %s137, %s139
      %p143 = scmp.eq.s32.totalorder %s19, 0
      %p144 = por %p142, %p143
      %p145 = scmp.ne.s32.totalorder %s137, %s139
      %p146 = scmp.eq.s32.totalorder %s24, 1
      %p147 = por %p145, %p146
      %p148 = scmp.ne.s32.totalorder %s139, %s140
      %p149 = scmp.eq.s32.totalorder %s24, 0
      %p150 = por %p148, %p149
      %p151 = scmp.ne.s32.totalorder %s139, %s140
      %p152 = scmp.eq.s32.totalorder %s25, 1
      %p153 = por %p151, %p152
      %p155 = scmp.ne.s32.totalorder %s140, %s154
      %p156 = scmp.eq.s32.totalorder %s25, 0
      %p157 = por %p155, %p156
      %s159 = sadd.s32 %s158, 1
      %p162 = scmp.eq.s32.totalorder %s19, 1
      %p163 = scmp.ne.s32.totalorder %s158, %s160
      %p164 = scmp.eq.s32.totalorder %s19, 0
      %p165 = por %p163, %p164
      %p166 = scmp.ne.s32.totalorder %s158, %s160
      %p167 = scmp.eq.s32.totalorder %s24, 1
      %p168 = por %p166, %p167
      %p169 = scmp.ne.s32.totalorder %s160, %s161
      %p170 = scmp.eq.s32.totalorder %s24, 0
      %p171 = por %p169, %p170
      %p172 = scmp.ne.s32.totalorder %s160, %s161
      %p173 = scmp.eq.s32.totalorder %s25, 1
      %p174 = por %p172, %p173
      %p176 = scmp.ne.s32.totalorder %s161, %s175
      %p177 = scmp.eq.s32.totalorder %s25, 0
      %p178 = por %p176, %p177
      %s180 = sadd.s32 %s179, 1
      %p183 = scmp.eq.s32.totalorder %s19, 1
      %p184 = scmp.ne.s32.totalorder %s179, %s181
      %p185 = scmp.eq.s32.totalorder %s19, 0
      %p186 = por %p184, %p185
      %p187 = scmp.ne.s32.totalorder %s179, %s181
      %p188 = scmp.eq.s32.totalorder %s24, 1
      %p189 = por %p187, %p188
      %p190 = scmp.ne.s32.totalorder %s181, %s182
      %p191 = scmp.eq.s32.totalorder %s24, 0
      %p192 = por %p190, %p191
      %p193 = scmp.ne.s32.totalorder %s181, %s182
      %p194 = scmp.eq.s32.totalorder %s25, 1
      %p195 = por %p193, %p194
      %p197 = scmp.ne.s32.totalorder %s182, %s196
      %p198 = scmp.eq.s32.totalorder %s25, 0
      %p199 = por %p197, %p198
      %s201 = sadd.s32 %s200, 1
      %p204 = scmp.eq.s32.totalorder %s19, 1
      %p205 = scmp.ne.s32.totalorder %s200, %s202
      %p206 = scmp.eq.s32.totalorder %s19, 0
      %p207 = por %p205, %p206
      %p208 = scmp.ne.s32.totalorder %s200, %s202
      %p209 = scmp.eq.s32.totalorder %s24, 1
      %p210 = por %p208, %p209
      %p211 = scmp.ne.s32.totalorder %s202, %s203
      %p212 = scmp.eq.s32.totalorder %s24, 0
      %p213 = por %p211, %p212
      %p214 = scmp.ne.s32.totalorder %s202, %s203
      %p215 = scmp.eq.s32.totalorder %s25, 1
      %p216 = por %p214, %p215
      %p218 = scmp.ne.s32.totalorder %s203, %s217
      %p219 = scmp.eq.s32.totalorder %s25, 0
      %p220 = por %p218, %p219
      %s222 = sadd.s32 %s221, 1
      %p225 = scmp.eq.s32.totalorder %s19, 1
      %p226 = scmp.ne.s32.totalorder %s221, %s223
      %p227 = scmp.eq.s32.totalorder %s19, 0
      %p228 = por %p226, %p227
      %p229 = scmp.ne.s32.totalorder %s221, %s223
      %p230 = scmp.eq.s32.totalorder %s24, 1
      %p231 = por %p229, %p230
      %p232 = scmp.ne.s32.totalorder %s223, %s224
      %p233 = scmp.eq.s32.totalorder %s24, 0
      %p234 = por %p232, %p233
      %p235 = scmp.ne.s32.totalorder %s223, %s224
      %p236 = scmp.eq.s32.totalorder %s25, 1
      %p237 = por %p235, %p236
      %p239 = scmp.ne.s32.totalorder %s224, %s238
      %p240 = scmp.eq.s32.totalorder %s25, 0
      %p241 = por %p239, %p240
      %s242 = ssub.s32 %s19, %s26
      %p243 = scmp.eq.s32.totalorder %s242, 0
      %s245 = sadd.s32 %s244, 1
      %s246 = scalar_select %p243, %s244, %s245
      %p249 = pneg %p243
      %p250 = scmp.eq.s32.totalorder %s19, 1
      %p251 = por %p249, %p250
      %p252 = scmp.ne.s32.totalorder %s244, %s247
      %p253 = scmp.eq.s32.totalorder %s19, 0
      %p254 = por %p252, %p253
      %p255 = scmp.ne.s32.totalorder %s244, %s247
      %p256 = scmp.eq.s32.totalorder %s24, 1
      %p257 = por %p255, %p256
      %p258 = scmp.ne.s32.totalorder %s247, %s248
      %p259 = scmp.eq.s32.totalorder %s24, 0
      %p260 = por %p258, %p259
      %p261 = scmp.ne.s32.totalorder %s247, %s248
      %p262 = scmp.eq.s32.totalorder %s25, 1
      %p263 = por %p261, %p262
      %p265 = scmp.ne.s32.totalorder %s248, %s264
      %p266 = scmp.eq.s32.totalorder %s25, 0
      %p267 = por %p265, %p266
      %p268 = scmp.le.s32.totalorder 1, %s19
      %p269 = scmp.lt.s32.totalorder %s19, 3
      %p270 = pnand %p268, %p269
      %p271 = pneg %p270
      // Predicated region
      $region9: #{tpu_custom_call.1} parent=5 // pred_check
        _
      $region10: #{tpu_custom_call.1} parent=5 // pred_check_branch
        %273 = sbr.rel (%p270) target = $region12
      $region11: #{tpu_custom_call.1} parent=5 // pred_region
        %s274 = ssub.s32 %s19, 1
        // Predicated region
        $region13: #{tpu_custom_call.1} parent=11 // pred_check
          %p275 = pneg %p66
        $region14: #{tpu_custom_call.1} parent=11 // pred_check_branch
          %277 = sbr.rel (%p275) target = $region16
        $region15: #{tpu_custom_call.1} parent=11 // pred_region
          _
        $region16: #{tpu_custom_call.1} parent=11 // pred_fallthru
          _
        // Predicated region
        $region17: #{tpu_custom_call.1} parent=11 // pred_check
          %p278 = pneg %p87
        $region18: #{tpu_custom_call.1} parent=11 // pred_check_branch
          %280 = sbr.rel (%p278) target = $region20
        $region19: #{tpu_custom_call.1} parent=11 // pred_region
          _
        $region20: #{tpu_custom_call.1} parent=11 // pred_fallthru
          _
        // Predicated region
        $region21: #{tpu_custom_call.1} parent=11 // pred_check
          %p281 = pneg %p108
        $region22: #{tpu_custom_call.1} parent=11 // pred_check_branch
          %283 = sbr.rel (%p281) target = $region24
        $region23: #{tpu_custom_call.1} parent=11 // pred_region
          _
        $region24: #{tpu_custom_call.1} parent=11 // pred_fallthru
          _
        // Predicated region
        $region25: #{tpu_custom_call.1} parent=11 // pred_check
          %p284 = pneg %p129
        $region26: #{tpu_custom_call.1} parent=11 // pred_check_branch
          %286 = sbr.rel (%p284) target = $region28
        $region27: #{tpu_custom_call.1} parent=11 // pred_region
          _
        $region28: #{tpu_custom_call.1} parent=11 // pred_fallthru
          _
        // Predicated region
        $region29: #{tpu_custom_call.1} parent=11 // pred_check
          %p287 = pneg %p150
        $region30: #{tpu_custom_call.1} parent=11 // pred_check_branch
          %289 = sbr.rel (%p287) target = $region32
        $region31: #{tpu_custom_call.1} parent=11 // pred_region
          _
        $region32: #{tpu_custom_call.1} parent=11 // pred_fallthru
          _
        // Predicated region
        $region33: #{tpu_custom_call.1} parent=11 // pred_check
          %p290 = pneg %p171
        $region34: #{tpu_custom_call.1} parent=11 // pred_check_branch
          %292 = sbr.rel (%p290) target = $region36
        $region35: #{tpu_custom_call.1} parent=11 // pred_region
          _
        $region36: #{tpu_custom_call.1} parent=11 // pred_fallthru
          _
        // Predicated region
        $region37: #{tpu_custom_call.1} parent=11 // pred_check
          %p293 = pneg %p192
        $region38: #{tpu_custom_call.1} parent=11 // pred_check_branch
          %295 = sbr.rel (%p293) target = $region40
        $region39: #{tpu_custom_call.1} parent=11 // pred_region
          _
        $region40: #{tpu_custom_call.1} parent=11 // pred_fallthru
          _
        // Predicated region
        $region41: #{tpu_custom_call.1} parent=11 // pred_check
          %p296 = pneg %p213
        $region42: #{tpu_custom_call.1} parent=11 // pred_check_branch
          %298 = sbr.rel (%p296) target = $region44
        $region43: #{tpu_custom_call.1} parent=11 // pred_region
          _
        $region44: #{tpu_custom_call.1} parent=11 // pred_fallthru
          _
        // Predicated region
        $region45: #{tpu_custom_call.1} parent=11 // pred_check
          %p299 = pneg %p234
        $region46: #{tpu_custom_call.1} parent=11 // pred_check_branch
          %301 = sbr.rel (%p299) target = $region48
        $region47: #{tpu_custom_call.1} parent=11 // pred_region
          _
        $region48: #{tpu_custom_call.1} parent=11 // pred_fallthru
          _
      $region12: #{tpu_custom_call.1} parent=5 // pred_fallthru
        _
      %p302 = scmp.lt.s32.totalorder %s19, 2
      // Predicated region
      $region49: #{tpu_custom_call.1} parent=5 // pred_check
        %p303 = pneg %p302
      $region50: #{tpu_custom_call.1} parent=5 // pred_check_branch
        %305 = sbr.rel (%p303) target = $region52
      $region51: #{tpu_custom_call.1} parent=5 // pred_region
        // Predicated region
        $region53: #{tpu_custom_call.1} parent=51 // pred_check
          %p306 = pneg %p39
        $region54: #{tpu_custom_call.1} parent=51 // pred_check_branch
          %308 = sbr.rel (%p306) target = $region56
        $region55: #{tpu_custom_call.1} parent=51 // pred_region
          %p309 = scmp.lt.s32.totalorder %s19, 1
          %s310 = scalar_select %p309, %s19, 1
          %s311 = smul.addr %s310, 2
          %s312 = smul.addr %s311, 4
          %s313 = scalar_lea.vmem %s0, %s312
        $region56: #{tpu_custom_call.1} parent=51 // pred_fallthru
          _
      $region52: #{tpu_custom_call.1} parent=5 // pred_fallthru
        _
      %p314 = scmp.le.s32.totalorder 1, %s19
      %p315 = scmp.lt.s32.totalorder %s19, 3
      %p316 = pnand %p314, %p315
      %p317 = pneg %p316
      // Predicated region
      $region57: #{tpu_custom_call.1} parent=5 // pred_check
        _
      $region58: #{tpu_custom_call.1} parent=5 // pred_check_branch
        %319 = sbr.rel (%p316) target = $region60
      $region59: #{tpu_custom_call.1} parent=5 // pred_region
        %s320 = ssub.s32 %s19, 1
        %p321 = scmp.lt.s32.totalorder %s24, 1
        %s322 = scalar_select %p321, %s24, 1
        %s323 = smul.addr %s322, 2
        %s324 = smul.addr %s323, 4
        %s325 = scalar_lea.vmem %s0, %s324
        %p326 = pneg %p45
        %p327 = pneg %p42
        %p328 = pneg %p66
        %p329 = pneg %p63
        %p330 = pneg %p87
        %p331 = pneg %p84
        %p332 = pneg %p108
        %p333 = pneg %p105
        %p334 = pneg %p129
        %p335 = pneg %p126
        %p336 = pneg %p150
        %p337 = pneg %p147
        %p338 = pneg %p171
        %p339 = pneg %p168
        %p340 = pneg %p192
        %p341 = pneg %p189
        %p342 = pneg %p213
        %p343 = pneg %p210
        %p344 = pneg %p234
        %p345 = pneg %p231
        %p346 = pneg %p260
        %p347 = pneg %p257
        %s348 = sand.u32 %s247, 1
        %s349 = scalar_lea.sflag [#allocation3], %s348
        %s350 = sand.u32 %s247, 1
        %s351 = smul.addr %s350, 8
        %s352 = scalar_lea.vmem [#allocation2], %s351
        %p353 = scmp.lt.s32.totalorder %s24, 1
        %s354 = scalar_select %p353, %s24, 1
        %s355 = smul.addr %s354, 2
        %s356 = smul.addr %s355, 4
        %s357 = scalar_lea.vmem %s0, %s356
        %v359 = vld [vmem:[%s357] sm:$0xff]
        %v360 = vld [vmem:[%s1] sm:$0xf]
        %v361 = vld [vmem:[%s1 + $0x4] sm:$0xf]
        %v362 = vld [vmem:[%s1 + $0x8] sm:$0xf]
        %v363 = vld [vmem:[%s1 + $0xc] sm:$0xf]
        %v364 = vld [vmem:[%s1 + $0x10] sm:$0xf]
        %v365 = vld [vmem:[%s1 + $0x14] sm:$0xf]
        %v366 = vld [vmem:[%s1 + $0x18] sm:$0xf]
        %v367 = vld [vmem:[%s1 + $0x1c] sm:$0xf]
        %v368 = vld [vmem:[%s1 + $0x20] sm:$0xf]
        %v369 = vld [vmem:[%s1 + $0x24] sm:$0xf]
        %v370 = vld [vmem:[%s1 + $0x28] sm:$0xf]
        %v371 = vld [vmem:[%s1 + $0x2c] sm:$0xf]
        %v372 = vld [vmem:[%s1 + $0x30] sm:$0xf]
        %v373 = vld [vmem:[%s1 + $0x34] sm:$0xf]
        %v374 = vld [vmem:[%s1 + $0x38] sm:$0xf]
        %v375 = vld [vmem:[%s1 + $0x3c] sm:$0xf]
        %v376 = vld [vmem:[%s1 + $0x40] sm:$0xf]
        %v377 = vld [vmem:[%s1 + $0x44] sm:$0xf]
        %v378 = vld [vmem:[%s1 + $0x48] sm:$0xf]
        %v379 = vld [vmem:[%s1 + $0x4c] sm:$0xf]
        %v380 = vld [vmem:[%s1 + $0x50] sm:$0xf]
        %v381 = vld [vmem:[%s1 + $0x54] sm:$0xf]
        %v382 = vld [vmem:[%s1 + $0x58] sm:$0xf]
        %v383 = vld [vmem:[%s1 + $0x5c] sm:$0xf]
        %v384 = vld [vmem:[%s1 + $0x60] sm:$0xf]
        %v385 = vld [vmem:[%s1 + $0x64] sm:$0xf]
        %v386 = vld [vmem:[%s1 + $0x68] sm:$0xf]
        %v387 = vld [vmem:[%s1 + $0x6c] sm:$0xf]
        %v388 = vld [vmem:[%s1 + $0x70] sm:$0xf]
        %v389 = vld [vmem:[%s1 + $0x74] sm:$0xf]
        %v390 = vld [vmem:[%s1 + $0x78] sm:$0xf]
        %v391 = vld [vmem:[%s1 + $0x7c] sm:$0xf]
        %v393 = vcombine.high %v359, %v359
        %v427 = vunpack.c.l.b16 %v360
        %v428 = vunpack.c.l.b16 %v361
        %v429 = vunpack.c.l.b16 %v362
        %v430 = vunpack.c.l.b16 %v363
        %v431 = vunpack.c.l.b16 %v364
        %v432 = vunpack.c.l.b16 %v365
        %v433 = vunpack.c.l.b16 %v366
        %v434 = vunpack.c.l.b16 %v367
        %v435 = vunpack.c.l.b16 %v368
        %v436 = vunpack.c.l.b16 %v369
        %v437 = vunpack.c.l.b16 %v370
        %v438 = vunpack.c.l.b16 %v371
        %v439 = vunpack.c.l.b16 %v372
        %v440 = vunpack.c.l.b16 %v373
        %v441 = vunpack.c.l.b16 %v374
        %v442 = vunpack.c.l.b16 %v375
        %v443 = vunpack.c.l.b16 %v376
        %v444 = vunpack.c.l.b16 %v377
        %v445 = vunpack.c.l.b16 %v378
        %v446 = vunpack.c.l.b16 %v379
        %v447 = vunpack.c.l.b16 %v380
        %v448 = vunpack.c.l.b16 %v381
        %v449 = vunpack.c.l.b16 %v382
        %v450 = vunpack.c.l.b16 %v383
        %v451 = vunpack.c.l.b16 %v384
        %v452 = vunpack.c.l.b16 %v385
        %v453 = vunpack.c.l.b16 %v386
        %v454 = vunpack.c.l.b16 %v387
        %v455 = vunpack.c.l.b16 %v388
        %v456 = vunpack.c.l.b16 %v389
        %v457 = vunpack.c.l.b16 %v390
        %v458 = vunpack.c.l.b16 %v391
        %v459 = vpack.c.b16 %v428, %v427
        %v460 = vpack.c.b16 %v430, %v429
        %v461 = vpack.c.b16 %v432, %v431
        %v462 = vpack.c.b16 %v434, %v433
        %v463 = vpack.c.b16 %v436, %v435
        %v464 = vpack.c.b16 %v438, %v437
        %v465 = vpack.c.b16 %v440, %v439
        %v466 = vpack.c.b16 %v442, %v441
        %v467 = vpack.c.b16 %v444, %v443
        %v468 = vpack.c.b16 %v446, %v445
        %v469 = vpack.c.b16 %v448, %v447
        %v470 = vpack.c.b16 %v450, %v449
        %v471 = vpack.c.b16 %v452, %v451
        %v472 = vpack.c.b16 %v454, %v453
        %v473 = vpack.c.b16 %v456, %v455
        %v474 = vpack.c.b16 %v458, %v457
        %491 = vmatprep.subr.bf16.mxu0 0
        %492 = vmatpush1.bf16.msra.mxu0 %v459
        %493 = vmatprep.subr.bf16.mxu0 0
        %494 = vmatpush1.bf16.msra.mxu0 %v460
        %495 = vmatprep.subr.bf16.mxu0 0
        %496 = vmatpush1.bf16.msra.mxu0 %v461
        %497 = vmatprep.subr.bf16.mxu0 0
        %498 = vmatpush1.bf16.msra.mxu0 %v462
        %499 = vmatprep.subr.bf16.mxu0 0
        %500 = vmatpush1.bf16.msra.mxu0 %v463
        %501 = vmatprep.subr.bf16.mxu0 0
        %502 = vmatpush1.bf16.msra.mxu0 %v464
        %503 = vmatprep.subr.bf16.mxu0 0
        %504 = vmatpush1.bf16.msra.mxu0 %v465
        %505 = vmatprep.subr.bf16.mxu0 0
        %506 = vmatpush1.bf16.msra.mxu0 %v466
        %507 = vmatprep.subr.bf16.mxu0 0
        %508 = vmatpush1.bf16.msra.mxu0 %v467
        %509 = vmatprep.subr.bf16.mxu0 0
        %510 = vmatpush1.bf16.msra.mxu0 %v468
        %511 = vmatprep.subr.bf16.mxu0 0
        %512 = vmatpush1.bf16.msra.mxu0 %v469
        %513 = vmatprep.subr.bf16.mxu0 0
        %514 = vmatpush1.bf16.msra.mxu0 %v470
        %515 = vmatprep.subr.bf16.mxu0 0
        %516 = vmatpush1.bf16.msra.mxu0 %v471
        %517 = vmatprep.subr.bf16.mxu0 0
        %518 = vmatpush1.bf16.msra.mxu0 %v472
        %519 = vmatprep.subr.bf16.mxu0 0
        %520 = vmatpush1.bf16.msra.mxu0 %v473
        %521 = vmatprep.subr.bf16.mxu0 0
        %522 = vmatpush1.bf16.msra.mxu0 %v474
        %523 = vmatprep.mubr.f32.mxu0 %v393
        %524 = vmatmul.mubr.f32.gmra.mrb[0].mxu0 %v359
        %v525 = vpop.f32.mrb[0].mxu0
        %v526 = vadd.f32 0.0, %v525
        %v527 = vpop.f32.mrb[0].mxu0
        %528 = vdwg.mxu0
        %v529 = vld [vmem:[%s4] sm:$0xff]
        %v530 = vld [vmem:[%s5] sm:$0xff]
        %532 = vset.pattern.permute.xlu0 0
        %533 = vperm.xlu0 %532, %v530
        %v534 = vpop.permute.xlu0 %533
        %vm536 = vcmask 31744
        %v538 = vsel %vm536, %v529, 0
        %vm540 = vcmask 1043456
        %v542 = vsel %vm540, %v526, 0
        %544 = vmatprep.subr.mxu0 0.0
        %545 = vmatpush1.msra.mxu0 %v542
        %546 = vmatprep.subr.mxu0 0.0
        %547 = vmatpush1.msra.mxu0 0.0
        %548 = vmatprep.subr.mxu0 0.0
        %549 = vmatpush1.msra.mxu0 0.0
        %550 = vmatprep.subr.mxu0 0.0
        %551 = vmatpush1.msra.mxu0 0.0
        %552 = vmatprep.subr.mxu0 0.0
        %553 = vmatpush1.msra.mxu0 0.0
        %554 = vmatprep.subr.mxu0 0.0
        %555 = vmatpush1.msra.mxu0 0.0
        %556 = vmatprep.subr.mxu0 0.0
        %557 = vmatpush1.msra.mxu0 0.0
        %558 = vmatprep.subr.mxu0 0.0
        %559 = vmatpush1.msra.mxu0 0.0
        %560 = vmatprep.subr.mxu0 0.0
        %561 = vmatpush1.msra.mxu0 0.0
        %562 = vmatprep.subr.mxu0 0.0
        %563 = vmatpush1.msra.mxu0 0.0
        %564 = vmatprep.subr.mxu0 0.0
        %565 = vmatpush1.msra.mxu0 0.0
        %566 = vmatprep.subr.mxu0 0.0
        %567 = vmatpush1.msra.mxu0 0.0
        %568 = vmatprep.subr.mxu0 0.0
        %569 = vmatpush1.msra.mxu0 0.0
        %570 = vmatprep.subr.mxu0 0.0
        %571 = vmatpush1.msra.mxu0 0.0
        %572 = vmatprep.subr.mxu0 0.0
        %573 = vmatpush1.msra.mxu0 0.0
        %574 = vmatprep.subr.mxu0 0.0
        %575 = vmatpush1.msra.mxu0 0.0
        %576 = vmatprep.subr.mxu0 0.0
        %577 = vmatpush1.msra.mxu0 0.0
        %578 = vmatprep.subr.mxu0 0.0
        %579 = vmatpush1.msra.mxu0 0.0
        %580 = vmatprep.subr.mxu0 0.0
        %581 = vmatpush1.msra.mxu0 0.0
        %582 = vmatprep.subr.mxu0 0.0
        %583 = vmatpush1.msra.mxu0 0.0
        %584 = vmatprep.subr.mxu0 0.0
        %585 = vmatpush1.msra.mxu0 0.0
        %586 = vmatprep.subr.mxu0 0.0
        %587 = vmatpush1.msra.mxu0 0.0
        %588 = vmatprep.subr.mxu0 0.0
        %589 = vmatpush1.msra.mxu0 0.0
        %590 = vmatprep.subr.mxu0 0.0
        %591 = vmatpush1.msra.mxu0 0.0
        %592 = vmatprep.subr.mxu0 0.0
        %593 = vmatpush1.msra.mxu0 0.0
        %594 = vmatprep.subr.mxu0 0.0
        %595 = vmatpush1.msra.mxu0 0.0
        %596 = vmatprep.subr.mxu0 0.0
        %597 = vmatpush1.msra.mxu0 0.0
        %598 = vmatprep.subr.mxu0 0.0
        %599 = vmatpush1.msra.mxu0 0.0
        %600 = vmatprep.subr.mxu0 0.0
        %601 = vmatpush1.msra.mxu0 0.0
        %602 = vmatprep.subr.mxu0 0.0
        %603 = vmatpush1.msra.mxu0 0.0
        %604 = vmatprep.subr.mxu0 0.0
        %605 = vmatpush1.msra.mxu0 0.0
        %606 = vmatprep.subr.mxu0 0.0
        %607 = vmatpush1.msra.mxu0 0.0
        %608 = vmatprep.mubr.f32.mxu0 0.0
        %609 = vmatmul.mubr.f32.gmra.mrb[0].mxu0 %v538
        %v610 = vpop.f32.mrb[0].mxu0
        %v611 = vadd.f32 %v534, %v610
        %v612 = vpop.f32.mrb[0].mxu0
        %613 = vdwg.mxu0
        %v614 = vadd.f32 %v611, 3.0
        %v615 = vmax.f32 %v614, 0.0
        %v616 = vmin.f32 %v615, 6.0
        %v617 = vmul.f32 %v611, %v616
        %v618 = vmul.f32 %v617, 0.16666667
        %v619 = vld [vmem:[%s6] sm:$0xf]
        %v620 = vld [vmem:[%s7] sm:$0xf]
        %622 = vset.pattern.permute.xlu0 0
        %623 = vperm.xlu0 %622, %v620
        %v624 = vpop.permute.xlu0 %623
        %vm626 = vcmask 64512
        %v628 = vsel %vm626, %v619, 0
        %630 = vmatprep.subr.mxu0 0.0
        %631 = vmatpush1.msra.mxu0 %v618
        %632 = vmatprep.subr.mxu0 0.0
        %633 = vmatpush1.msra.mxu0 0.0
        %634 = vmatprep.subr.mxu0 0.0
        %635 = vmatpush1.msra.mxu0 0.0
        %636 = vmatprep.subr.mxu0 0.0
        %637 = vmatpush1.msra.mxu0 0.0
        %638 = vmatprep.subr.mxu0 0.0
        %639 = vmatpush1.msra.mxu0 0.0
        %640 = vmatprep.subr.mxu0 0.0
        %641 = vmatpush1.msra.mxu0 0.0
        %642 = vmatprep.subr.mxu0 0.0
        %643 = vmatpush1.msra.mxu0 0.0
        %644 = vmatprep.subr.mxu0 0.0
        %645 = vmatpush1.msra.mxu0 0.0
        %646 = vmatprep.subr.mxu0 0.0
        %647 = vmatpush1.msra.mxu0 0.0
        %648 = vmatprep.subr.mxu0 0.0
        %649 = vmatpush1.msra.mxu0 0.0
        %650 = vmatprep.subr.mxu0 0.0
        %651 = vmatpush1.msra.mxu0 0.0
        %652 = vmatprep.subr.mxu0 0.0
        %653 = vmatpush1.msra.mxu0 0.0
        %654 = vmatprep.subr.mxu0 0.0
        %655 = vmatpush1.msra.mxu0 0.0
        %656 = vmatprep.subr.mxu0 0.0
        %657 = vmatpush1.msra.mxu0 0.0
        %658 = vmatprep.subr.mxu0 0.0
        %659 = vmatpush1.msra.mxu0 0.0
        %660 = vmatprep.subr.mxu0 0.0
        %661 = vmatpush1.msra.mxu0 0.0
        %662 = vmatprep.subr.mxu0 0.0
        %663 = vmatpush1.msra.mxu0 0.0
        %664 = vmatprep.subr.mxu0 0.0
        %665 = vmatpush1.msra.mxu0 0.0
        %666 = vmatprep.subr.mxu0 0.0
        %667 = vmatpush1.msra.mxu0 0.0
        %668 = vmatprep.subr.mxu0 0.0
        %669 = vmatpush1.msra.mxu0 0.0
        %670 = vmatprep.subr.mxu0 0.0
        %671 = vmatpush1.msra.mxu0 0.0
        %672 = vmatprep.subr.mxu0 0.0
        %673 = vmatpush1.msra.mxu0 0.0
        %674 = vmatprep.subr.mxu0 0.0
        %675 = vmatpush1.msra.mxu0 0.0
        %676 = vmatprep.subr.mxu0 0.0
        %677 = vmatpush1.msra.mxu0 0.0
        %678 = vmatprep.subr.mxu0 0.0
        %679 = vmatpush1.msra.mxu0 0.0
        %680 = vmatprep.subr.mxu0 0.0
        %681 = vmatpush1.msra.mxu0 0.0
        %682 = vmatprep.subr.mxu0 0.0
        %683 = vmatpush1.msra.mxu0 0.0
        %684 = vmatprep.subr.mxu0 0.0
        %685 = vmatpush1.msra.mxu0 0.0
        %686 = vmatprep.subr.mxu0 0.0
        %687 = vmatpush1.msra.mxu0 0.0
        %688 = vmatprep.subr.mxu0 0.0
        %689 = vmatpush1.msra.mxu0 0.0
        %690 = vmatprep.subr.mxu0 0.0
        %691 = vmatpush1.msra.mxu0 0.0
        %692 = vmatprep.subr.mxu0 0.0
        %693 = vmatpush1.msra.mxu0 0.0
        %694 = vmatprep.mubr.f32.mxu0 0.0
        %695 = vmatmul.mubr.f32.gmra.mrb[0].mxu0 %v628
        %v696 = vpop.f32.mrb[0].mxu0
        %v697 = vadd.f32 %v624, %v696
        %v698 = vpop.f32.mrb[0].mxu0
        %699 = vdwg.mxu0
        %v700 = vxor.u32 %v697, 2147483648
        %v701 = vmul.f32 %v700, 1.442695
        %v702 = vpow.pop %v701
        %v703 = vadd.f32 %v702, 1.0
        %v704 = vrcp.pop %v703
        %v705 = vmul.f32 1.0, %v704
        %v706 = vld [vmem:[%s8] sm:$0xf]
        %v707 = vld [vmem:[%s9] sm:$0xf]
        %709 = vset.pattern.permute.xlu0 0
        %710 = vperm.xlu0 %709, %v707
        %v711 = vpop.permute.xlu0 %710
        %714 = vrot.lane.b32.xlu0 %v618, 112
        %v715 = vpop.permute.xlu0 %714
        %v718 = vsel %vm626, %v706, 0
        %720 = vmatprep.subr.mxu0 0.0
        %721 = vmatpush1.msra.mxu0 %v715
        %722 = vmatprep.subr.mxu0 0.0
        %723 = vmatpush1.msra.mxu0 0.0
        %724 = vmatprep.subr.mxu0 0.0
        %725 = vmatpush1.msra.mxu0 0.0
        %726 = vmatprep.subr.mxu0 0.0
        %727 = vmatpush1.msra.mxu0 0.0
        %728 = vmatprep.subr.mxu0 0.0
        %729 = vmatpush1.msra.mxu0 0.0
        %730 = vmatprep.subr.mxu0 0.0
        %731 = vmatpush1.msra.mxu0 0.0
        %732 = vmatprep.subr.mxu0 0.0
        %733 = vmatpush1.msra.mxu0 0.0
        %734 = vmatprep.subr.mxu0 0.0
        %735 = vmatpush1.msra.mxu0 0.0
        %736 = vmatprep.subr.mxu0 0.0
        %737 = vmatpush1.msra.mxu0 0.0
        %738 = vmatprep.subr.mxu0 0.0
        %739 = vmatpush1.msra.mxu0 0.0
        %740 = vmatprep.subr.mxu0 0.0
        %741 = vmatpush1.msra.mxu0 0.0
        %742 = vmatprep.subr.mxu0 0.0
        %743 = vmatpush1.msra.mxu0 0.0
        %744 = vmatprep.subr.mxu0 0.0
        %745 = vmatpush1.msra.mxu0 0.0
        %746 = vmatprep.subr.mxu0 0.0
        %747 = vmatpush1.msra.mxu0 0.0
        %748 = vmatprep.subr.mxu0 0.0
        %749 = vmatpush1.msra.mxu0 0.0
        %750 = vmatprep.subr.mxu0 0.0
        %751 = vmatpush1.msra.mxu0 0.0
        %752 = vmatprep.subr.mxu0 0.0
        %753 = vmatpush1.msra.mxu0 0.0
        %754 = vmatprep.subr.mxu0 0.0
        %755 = vmatpush1.msra.mxu0 0.0
        %756 = vmatprep.subr.mxu0 0.0
        %757 = vmatpush1.msra.mxu0 0.0
        %758 = vmatprep.subr.mxu0 0.0
        %759 = vmatpush1.msra.mxu0 0.0
        %760 = vmatprep.subr.mxu0 0.0
        %761 = vmatpush1.msra.mxu0 0.0
        %762 = vmatprep.subr.mxu0 0.0
        %763 = vmatpush1.msra.mxu0 0.0
        %764 = vmatprep.subr.mxu0 0.0
        %765 = vmatpush1.msra.mxu0 0.0
        %766 = vmatprep.subr.mxu0 0.0
        %767 = vmatpush1.msra.mxu0 0.0
        %768 = vmatprep.subr.mxu0 0.0
        %769 = vmatpush1.msra.mxu0 0.0
        %770 = vmatprep.subr.mxu0 0.0
        %771 = vmatpush1.msra.mxu0 0.0
        %772 = vmatprep.subr.mxu0 0.0
        %773 = vmatpush1.msra.mxu0 0.0
        %774 = vmatprep.subr.mxu0 0.0
        %775 = vmatpush1.msra.mxu0 0.0
        %776 = vmatprep.subr.mxu0 0.0
        %777 = vmatpush1.msra.mxu0 0.0
        %778 = vmatprep.subr.mxu0 0.0
        %779 = vmatpush1.msra.mxu0 0.0
        %780 = vmatprep.subr.mxu0 0.0
        %781 = vmatpush1.msra.mxu0 0.0
        %782 = vmatprep.subr.mxu0 0.0
        %783 = vmatpush1.msra.mxu0 0.0
        %784 = vmatprep.mubr.f32.mxu0 0.0
        %785 = vmatmul.mubr.f32.gmra.mrb[0].mxu0 %v718
        %v786 = vpop.f32.mrb[0].mxu0
        %v787 = vadd.f32 %v711, %v786
        %v788 = vpop.f32.mrb[0].mxu0
        %789 = vdwg.mxu0
        %v790 = vxor.u32 %v787, 2147483648
        %v791 = vmul.f32 %v790, 1.442695
        %v792 = vpow.pop %v791
        %v793 = vadd.f32 %v792, 1.0
        %v794 = vrcp.pop %v793
        %v795 = vmul.f32 1.0, %v794
        %v796 = vpack.c.bf16 %v705, %v705
        %v797 = vpack.c.bf16 %v795, %v795
        %v798 = vld [vmem:[%s2] sm:$0xff]
        %v799 = vld [vmem:[%s2 + $0x8] sm:$0xff]
        %v802 = vunpack.c.l.b16 %v798
        %v803 = vunpack.c.h.b16 %v798
        %v804 = vunpack.c.l.b16 %v799
        %v805 = vunpack.c.h.b16 %v799
        %v806 = vpack.c.b16 %v804, %v802
        %v807 = vpack.c.b16 %v805, %v803
        %vm810 = vcmask 130048
        %v812 = vsel %vm810, %v796, 0
        %814 = vmatprep.subr.bf16.mxu0 %v807
        %815 = vmatpush1.bf16.msra.mxu0 %v806
        %816 = vmatprep.subr.bf16.mxu0 0
        %817 = vmatpush1.bf16.msra.mxu0 0
        %818 = vmatprep.subr.bf16.mxu0 0
        %819 = vmatpush1.bf16.msra.mxu0 0
        %820 = vmatprep.subr.bf16.mxu0 0
        %821 = vmatpush1.bf16.msra.mxu0 0
        %822 = vmatprep.subr.bf16.mxu0 0
        %823 = vmatpush1.bf16.msra.mxu0 0
        %824 = vmatprep.subr.bf16.mxu0 0
        %825 = vmatpush1.bf16.msra.mxu0 0
        %826 = vmatprep.subr.bf16.mxu0 0
        %827 = vmatpush1.bf16.msra.mxu0 0
        %828 = vmatprep.subr.bf16.mxu0 0
        %829 = vmatpush1.bf16.msra.mxu0 0
        %830 = vmatprep.subr.bf16.mxu0 0
        %831 = vmatpush1.bf16.msra.mxu0 0
        %832 = vmatprep.subr.bf16.mxu0 0
        %833 = vmatpush1.bf16.msra.mxu0 0
        %834 = vmatprep.subr.bf16.mxu0 0
        %835 = vmatpush1.bf16.msra.mxu0 0
        %836 = vmatprep.subr.bf16.mxu0 0
        %837 = vmatpush1.bf16.msra.mxu0 0
        %838 = vmatprep.subr.bf16.mxu0 0
        %839 = vmatpush1.bf16.msra.mxu0 0
        %840 = vmatprep.subr.bf16.mxu0 0
        %841 = vmatpush1.bf16.msra.mxu0 0
        %842 = vmatprep.subr.bf16.mxu0 0
        %843 = vmatpush1.bf16.msra.mxu0 0
        %844 = vmatprep.subr.bf16.mxu0 0
        %845 = vmatpush1.bf16.msra.mxu0 0
        %846 = vmatprep.mubr.bf16.mxu0 0
        %847 = vmatmul.mubr.bf16.gmra.mrb[0].mxu0 %v812
        %v848 = vpop.f32.mrb[0].mxu0
        %v849 = vadd.f32 0.0, %v848
        %v850 = vpop.f32.mrb[0].mxu0
        %v851 = vadd.f32 0.0, %v850
        %v852 = vpop.f32.mrb[0].mxu0
        %v853 = vpop.f32.mrb[0].mxu0
        %854 = vdwg.mxu0
        %v855 = vld [vmem:[%s3] sm:$0xff]
        %v856 = vld [vmem:[%s3 + $0x8] sm:$0xff]
        %v859 = vunpack.c.l.b16 %v855
        %v860 = vunpack.c.h.b16 %v855
        %v861 = vunpack.c.l.b16 %v856
        %v862 = vunpack.c.h.b16 %v856
        %v863 = vpack.c.b16 %v861, %v859
        %v864 = vpack.c.b16 %v862, %v860
        %v868 = vsel %vm810, %v797, 0
        %870 = vmatprep.subr.bf16.mxu0 %v864
        %871 = vmatpush1.bf16.msra.mxu0 %v863
        %872 = vmatprep.subr.bf16.mxu0 0
        %873 = vmatpush1.bf16.msra.mxu0 0
        %874 = vmatprep.subr.bf16.mxu0 0
        %875 = vmatpush1.bf16.msra.mxu0 0
        %876 = vmatprep.subr.bf16.mxu0 0
        %877 = vmatpush1.bf16.msra.mxu0 0
        %878 = vmatprep.subr.bf16.mxu0 0
        %879 = vmatpush1.bf16.msra.mxu0 0
        %880 = vmatprep.subr.bf16.mxu0 0
        %881 = vmatpush1.bf16.msra.mxu0 0
        %882 = vmatprep.subr.bf16.mxu0 0
        %883 = vmatpush1.bf16.msra.mxu0 0
        %884 = vmatprep.subr.bf16.mxu0 0
        %885 = vmatpush1.bf16.msra.mxu0 0
        %886 = vmatprep.subr.bf16.mxu0 0
        %887 = vmatpush1.bf16.msra.mxu0 0
        %888 = vmatprep.subr.bf16.mxu0 0
        %889 = vmatpush1.bf16.msra.mxu0 0
        %890 = vmatprep.subr.bf16.mxu0 0
        %891 = vmatpush1.bf16.msra.mxu0 0
        %892 = vmatprep.subr.bf16.mxu0 0
        %893 = vmatpush1.bf16.msra.mxu0 0
        %894 = vmatprep.subr.bf16.mxu0 0
        %895 = vmatpush1.bf16.msra.mxu0 0
        %896 = vmatprep.subr.bf16.mxu0 0
        %897 = vmatpush1.bf16.msra.mxu0 0
        %898 = vmatprep.subr.bf16.mxu0 0
        %899 = vmatpush1.bf16.msra.mxu0 0
        %900 = vmatprep.subr.bf16.mxu0 0
        %901 = vmatpush1.bf16.msra.mxu0 0
        %902 = vmatprep.mubr.bf16.mxu0 0
        %903 = vmatmul.mubr.bf16.gmra.mrb[0].mxu0 %v868
        %v904 = vpop.f32.mrb[0].mxu0
        %v905 = vadd.f32 0.0, %v904
        %v906 = vpop.f32.mrb[0].mxu0
        %v907 = vadd.f32 0.0, %v906
        %v908 = vpop.f32.mrb[0].mxu0
        %v909 = vpop.f32.mrb[0].mxu0
        %910 = vdwg.mxu0
        %v913 = vcombine.low %v905, %v907
        %v915 = vmul.f32 %v359, %v913
        %v918 = vcombine.low %v849, %v851
        %v920 = vmul.f32 %v915, %v918
        %921 = vst [vmem:[%s352] sm:$0xff] %v920
        %s922 = sand.u32 %s247, 1
        %s923 = scalar_lea.sflag [#allocation3], %s922
        %s924 = sand.u32 %s247, 1
        %s925 = smul.addr %s924, 8
        %s926 = scalar_lea.vmem [#allocation2], %s925
        // Predicated region
        $region61: #{tpu_custom_call.1} parent=59 // pred_check
          %p927 = pneg %p257
        $region62: #{tpu_custom_call.1} parent=59 // pred_check_branch
          %929 = sbr.rel (%p927) target = $region64
        $region63: #{tpu_custom_call.1} parent=59 // pred_region
          %s931 = ssub.s32 128, 128
          %932 = vsyncadd %s923, %s931
          %s933 = smul.addr %s24, 2
          %s934 = smul.addr %s933, 64
          %s935 = scalar_lea.hbm %s10, %s934
          %s937 = sshll.u32 %s926, 4
          %s938 = int_to_ptr.vmem [resolvable:$true] %s937
          %940 = dma.vmem_to_hbm [thread:$0]  %s938, 128, %s935, %s923
        $region64: #{tpu_custom_call.1} parent=59 // pred_fallthru
          _
      $region60: #{tpu_custom_call.1} parent=5 // pred_fallthru
        _
      %p941 = scmp.le.s32.totalorder 2, %s19
      // Predicated region
      $region65: #{tpu_custom_call.1} parent=5 // pred_check
        %p942 = pneg %p941
      $region66: #{tpu_custom_call.1} parent=5 // pred_check_branch
        %944 = sbr.rel (%p942) target = $region68
      $region67: #{tpu_custom_call.1} parent=5 // pred_region
        %s945 = ssub.s32 %s19, 2
        // Predicated region
        $region69: #{tpu_custom_call.1} parent=67 // pred_check
          %p946 = pneg %p263
        $region70: #{tpu_custom_call.1} parent=67 // pred_check_branch
          %948 = sbr.rel (%p946) target = $region72
        $region71: #{tpu_custom_call.1} parent=67 // pred_region
          %s949 = sand.u32 %s248, 1
          %s950 = scalar_lea.sflag [#allocation3], %s949
          %s951 = sand.u32 %s248, 1
          %s952 = smul.addr %s951, 8
          %s953 = scalar_lea.vmem [#allocation2], %s952
          %954 = dma.done %s950, 128
        $region72: #{tpu_custom_call.1} parent=67 // pred_fallthru
          _
      $region68: #{tpu_custom_call.1} parent=5 // pred_fallthru
        _
    $region6: #{tpu_custom_call.1} parent=1 // loop_footer
      %s23 = sadd.s32 1, %s19
    $region7: #{tpu_custom_call.1} parent=1 // loop_footer_branch
      %18 = sbr.rel target = $region3
    $region8: #{tpu_custom_call.1} parent=1 // loop_exit
      _
    %955 = vsyncpa [#allocation3], 1
    %s956 = scalar_lea.sflag [#allocation3], 1
    %957 = vsyncpa %s956, 1

</llo_original>
